<compile_context>
chip_gen: v6e
topology: v6e:2x2x1
jax: 0.10.0
libtpu: 0.0.40
codegen_flags: <defaults>
</compile_context>

<pallas_src>
import functools

import jax
import jax.numpy as jnp
import numpy as np
from jax.experimental import pallas as pl
from jax.experimental.pallas import tpu as pltpu


# ----------------------------------------------------------------------------
# Fused kernel: [embedded input] -> L stacked LSTM layers -> Linear head.
# ----------------------------------------------------------------------------
def _make_fused_kernel(B, T, H, L):
    """Build the fused forward kernel for fixed static shapes."""
    H4 = 4 * H

    def kernel(*refs):
        x_ref = refs[0]                        # (T*B, E) time-major embedded input
        layer_refs = refs[1:1 + 3 * L]         # per layer: w_ih_t, w_hh_t, bias
        lin_w_ref = refs[1 + 3 * L]            # (H, V)
        lin_b_ref = refs[2 + 3 * L]            # (1, V)
        out_ref = refs[3 + 3 * L]              # (B*T, V)
        gx_scr = refs[4 + 3 * L]               # (T*B, 4H) hoisted input projection
        seq_scr = refs[5 + 3 * L]              # (T*B, H)  time-major inter-layer h
        bm_scr = refs[6 + 3 * L]               # (B*T, H)  b-major last-layer h

        # g-gate lane mask, hoisted once (JAX does not CSE broadcasts in loops).
        lane = jax.lax.broadcasted_iota(jnp.int32, (B, H4), 1)
        is_g_lane = jnp.logical_and(lane >= 2 * H, lane < 3 * H)

        for l in range(L):
            wih_ref, whh_ref, b_ref = layer_refs[3 * l:3 * l + 3]
            is_last = (l == L - 1)

            x_in = x_ref[...] if l == 0 else seq_scr[...]        # (T*B, E_in)
            # Input projection for ALL timesteps in one MXU matmul, bias folded in.
            gx_scr[...] = (
                jnp.dot(x_in, wih_ref[...], preferred_element_type=jnp.float32)
                + b_ref[...]
            )
            whh = whh_ref[...]                                   # (H, 4H), hoisted

            def step(t, carry, *, is_last=is_last, whh=whh):
                h, c = carry
                row = pl.multiple_of(t * B, B)
                gates = gx_scr[pl.ds(row, B), :] + jnp.dot(
                    h, whh, preferred_element_type=jnp.float32)  # (B, 4H)
                # Full-vreg nonlinearities + one select instead of 4 sub-vreg calls.
                sig_all = jax.nn.sigmoid(gates)
                tanh_all = jnp.tanh(gates)
                act = jnp.where(is_g_lane, tanh_all, sig_all)
                i_g = act[:, 0 * H:1 * H]
                f_g = act[:, 1 * H:2 * H]
                g_g = act[:, 2 * H:3 * H]
                o_g = act[:, 3 * H:4 * H]
                c = f_g * c + i_g * g_g
                h = o_g * jnp.tanh(c)
                if is_last:
                    # b-major placement so the epilogue matmul matches
                    # PyTorch's (B, T, H).reshape(-1, H) row order.
                    for b in range(B):
                        bm_scr[pl.ds(b * T + t, 1), :] = h[b:b + 1, :]
                else:
                    seq_scr[pl.ds(row, B), :] = h
                return (h, c)

            h0 = jnp.zeros((B, H), jnp.float32)
            c0 = jnp.zeros((B, H), jnp.float32)
            jax.lax.fori_loop(0, T, step, (h0, c0), unroll=True)

        # Fused final Linear: one matmul + bias, single store at the end.
        out_ref[...] = (
            jnp.dot(bm_scr[...], lin_w_ref[...],
                    preferred_element_type=jnp.float32)
            + lin_b_ref[...]
        )

    return kernel


# ----------------------------------------------------------------------------
# One-time parameter preparation (pre-transpose weights, fold LSTM biases).
# ----------------------------------------------------------------------------
def prepare_params(params):
    return {
        "embedding": params["embedding"],
        "layers": [
            {
                "w_ih_t": layer["w_ih"].T,                          # (E_in, 4H)
                "w_hh_t": layer["w_hh"].T,                          # (H, 4H)
                "bias": (layer["b_ih"] + layer["b_hh"]).reshape(1, -1),
            }
            for layer in params["lstm"]
        ],
        "lin_w_t": params["lin_w"].T,                               # (H, V)
        "lin_b": params["lin_b"].reshape(1, -1),                    # (1, V)
    }


# ----------------------------------------------------------------------------
# Forward pass (matches QuestionGenerator.forward, minus the prints).
# ----------------------------------------------------------------------------
@jax.jit
def question_generator_forward(tokens, prepared):
    # tokens: (B, T) int32
    B, T = tokens.shape
    emb_table = prepared["embedding"]
    layers = prepared["layers"]
    L = len(layers)
    E = emb_table.shape[1]
    H = layers[0]["w_hh_t"].shape[0]
    V = prepared["lin_w_t"].shape[1]

    # Embedding gather (plain-JAX glue), flattened time-major so each time
    # step's (B, E) rows are contiguous for the in-kernel recurrence.
    ids_tm = tokens.T.reshape(-1)                                    # (T*B,)
    x2d = jnp.take(emb_table, ids_tm, axis=0).astype(jnp.float32)    # (T*B, E)

    inputs = [x2d]
    in_specs = [pl.BlockSpec((T * B, E), lambda i: (0, 0))]
    for lyr in layers:
        e_in = lyr["w_ih_t"].shape[0]
        inputs += [lyr["w_ih_t"], lyr["w_hh_t"], lyr["bias"]]
        in_specs += [
            pl.BlockSpec((e_in, 4 * H), lambda i: (0, 0)),
            pl.BlockSpec((H, 4 * H), lambda i: (0, 0)),
            pl.BlockSpec((1, 4 * H), lambda i: (0, 0)),
        ]
    inputs += [prepared["lin_w_t"], prepared["lin_b"]]
    in_specs += [
        pl.BlockSpec((H, V), lambda i: (0, 0)),
        pl.BlockSpec((1, V), lambda i: (0, 0)),
    ]

    kernel = _make_fused_kernel(B, T, H, L)

    return pl.pallas_call(
        kernel,
        out_shape=jax.ShapeDtypeStruct((B * T, V), jnp.float32),
        grid_spec=pltpu.PrefetchScalarGridSpec(
            num_scalar_prefetch=0,
            grid=(1,),
            in_specs=in_specs,
            out_specs=pl.BlockSpec((B * T, V), lambda i: (0, 0)),
            scratch_shapes=[
                pltpu.VMEM((T * B, 4 * H), jnp.float32),   # hoisted gate projection
                pltpu.VMEM((T * B, H), jnp.float32),       # inter-layer h (time-major)
                pltpu.VMEM((B * T, H), jnp.float32),       # last-layer h (b-major)
            ],
        ),
        compiler_params=pltpu.CompilerParams(
            dimension_semantics=("arbitrary",)),
    )(*inputs)


# ----------------------------------------------------------------------------
# Parameter init (deterministic, synthetic — mirrors the nn.Module shapes).
# ----------------------------------------------------------------------------
def init_params(key, dict_size, emb_dim, hidden, num_layers):
    keys = jax.random.split(key, 2 + 4 * num_layers)
    params = {
        "embedding": 0.1 * jax.random.normal(keys[0], (dict_size, emb_dim),
                                             jnp.float32),
        "lstm": [],
        "lin_w": 0.1 * jax.random.normal(keys[1], (dict_size, hidden),
                                         jnp.float32),   # (V, H) like nn.Linear
        "lin_b": 0.01 * jnp.arange(dict_size, dtype=jnp.float32),
    }
    for l in range(num_layers):
        in_dim = emb_dim if l == 0 else hidden
        k0, k1, k2, k3 = keys[2 + 4 * l: 6 + 4 * l]
        params["lstm"].append({
            "w_ih": 0.1 * jax.random.normal(k0, (4 * hidden, in_dim), jnp.float32),
            "w_hh": 0.1 * jax.random.normal(k1, (4 * hidden, hidden), jnp.float32),
            "b_ih": 0.05 * jax.random.normal(k2, (4 * hidden,), jnp.float32),
            "b_hh": 0.05 * jax.random.normal(k3, (4 * hidden,), jnp.float32),
        })
    return params


# ----------------------------------------------------------------------------
# Pure-JAX reference (lax.scan LSTM) used for a silent correctness check.
# ----------------------------------------------------------------------------
def _reference_forward(tokens, params):
    emb = jnp.take(params["embedding"], tokens, axis=0)    # (B, T, E)
    x = emb
    B = x.shape[0]
    for layer in params["lstm"]:
        H = layer["w_hh"].shape[1]
        w_ih_t, w_hh_t = layer["w_ih"].T, layer["w_hh"].T
        bias = layer["b_ih"] + layer["b_hh"]

        def step(carry, x_t):
            h, c = carry
            gates = x_t @ w_ih_t + h @ w_hh_t + bias
            i = jax.nn.sigmoid(gates[:, 0 * H:1 * H])
            f = jax.nn.sigmoid(gates[:, 1 * H:2 * H])
            g = jnp.tanh(gates[:, 2 * H:3 * H])
            o = jax.nn.sigmoid(gates[:, 3 * H:4 * H])
            c = f * c + i * g
            h = o * jnp.tanh(c)
            return (h, c), h

        init = (jnp.zeros((B, H), jnp.float32), jnp.zeros((B, H), jnp.float32))
        _, hs = jax.lax.scan(step, init, jnp.transpose(x, (1, 0, 2)))  # (T,B,H)
        x = jnp.transpose(hs, (1, 0, 2))
    H = x.shape[-1]
    lstm_out = x.reshape(-1, H)
    return lstm_out @ params["lin_w"].T + params["lin_b"]


if __name__ == "__main__":
    # Small shapes consistent with the module's forward.
    DICT_SIZE = 16     # dictionarySize (V)
    EMB_DIM = 32       # embeddingDim   (E)
    HIDDEN = 32        # hiddenSize     (H)
    NUM_LAYERS = 2     # numOfLayers
    B, T = 2, 8        # batch, sequence length

    key = jax.random.PRNGKey(0)
    pkey, tkey = jax.random.split(key)
    params = init_params(pkey, DICT_SIZE, EMB_DIM, HIDDEN, NUM_LAYERS)
    prepared = prepare_params(params)          # one-time weight prep
    tokens = jax.random.randint(tkey, (B, T), 0, DICT_SIZE, dtype=jnp.int32)

    out = question_generator_forward(tokens, prepared)
    out = jax.block_until_ready(out)

    ref = _reference_forward(tokens, params)
    assert out.shape == (B * T, DICT_SIZE)
    np.testing.assert_allclose(np.asarray(out), np.asarray(ref),
                               rtol=1e-4, atol=1e-4)

    print("KERNEL_OK")
</pallas_src>

<mosaic_0001>
module attributes {stable_mosaic.version = 11 : i64} {
  func.func @kernel(%arg0: i32, %arg1: memref<16x32xf32, #tpu.memory_space<vmem>>, %arg2: memref<32x128xf32, #tpu.memory_space<vmem>>, %arg3: memref<32x128xf32, #tpu.memory_space<vmem>>, %arg4: memref<1x128xf32, #tpu.memory_space<vmem>>, %arg5: memref<32x128xf32, #tpu.memory_space<vmem>>, %arg6: memref<32x128xf32, #tpu.memory_space<vmem>>, %arg7: memref<1x128xf32, #tpu.memory_space<vmem>>, %arg8: memref<32x16xf32, #tpu.memory_space<vmem>>, %arg9: memref<1x16xf32, #tpu.memory_space<vmem>>, %arg10: memref<16x16xf32, #tpu.memory_space<vmem>>, %arg11: memref<16x128xf32, #tpu.memory_space<vmem>>, %arg12: memref<16x32xf32, #tpu.memory_space<vmem>>, %arg13: memref<16x32xf32, #tpu.memory_space<vmem>>) attributes {dimension_semantics = [#tpu.dimension_semantics<arbitrary>], iteration_bounds = array<i64: 1>, scalar_prefetch = 0 : i64, scratch_operands = 3 : i64, tpu.core_type = #tpu.core_type<tc>, window_params = [{pipeline_mode = #tpu.pipeline_mode<synchronous>, transform_indices = @transform_0, window_bounds = array<i64: 16, 32>}, {pipeline_mode = #tpu.pipeline_mode<synchronous>, transform_indices = @transform_1, window_bounds = array<i64: 32, 128>}, {pipeline_mode = #tpu.pipeline_mode<synchronous>, transform_indices = @transform_2, window_bounds = array<i64: 32, 128>}, {pipeline_mode = #tpu.pipeline_mode<synchronous>, transform_indices = @transform_3, window_bounds = array<i64: 1, 128>}, {pipeline_mode = #tpu.pipeline_mode<synchronous>, transform_indices = @transform_4, window_bounds = array<i64: 32, 128>}, {pipeline_mode = #tpu.pipeline_mode<synchronous>, transform_indices = @transform_5, window_bounds = array<i64: 32, 128>}, {pipeline_mode = #tpu.pipeline_mode<synchronous>, transform_indices = @transform_6, window_bounds = array<i64: 1, 128>}, {pipeline_mode = #tpu.pipeline_mode<synchronous>, transform_indices = @transform_7, window_bounds = array<i64: 32, 16>}, {pipeline_mode = #tpu.pipeline_mode<synchronous>, transform_indices = @transform_8, window_bounds = array<i64: 1, 16>}, {pipeline_mode = #tpu.pipeline_mode<synchronous>, transform_indices = @transform_9, window_bounds = array<i64: 16, 16>}]} {
    %0 = tpu.iota {dimensions = array<i32: 1>} : vector<2x128xi32>
    %c64_i32 = arith.constant 64 : i32
    %1 = vector.broadcast %c64_i32 : i32 to vector<2x128xi32>
    %2 = arith.cmpi sge, %0, %1 : vector<2x128xi32>
    %c96_i32 = arith.constant 96 : i32
    %3 = vector.broadcast %c96_i32 : i32 to vector<2x128xi32>
    %4 = arith.cmpi slt, %0, %3 : vector<2x128xi32>
    %5 = arith.andi %2, %4 : vector<2x128xi1>
    %c0 = arith.constant 0 : index
    %c0_0 = arith.constant 0 : index
    %6 = vector.load %arg1[%c0, %c0_0] : memref<16x32xf32, #tpu.memory_space<vmem>>, vector<16x32xf32>
    %c0_1 = arith.constant 0 : index
    %c0_2 = arith.constant 0 : index
    %7 = vector.load %arg2[%c0_1, %c0_2] : memref<32x128xf32, #tpu.memory_space<vmem>>, vector<32x128xf32>
    %cst = arith.constant dense<0.000000e+00> : vector<16x128xf32>
    %8 = tpu.matmul %6, %7, %cst {dimension_numbers = #tpu.dot_dimension_numbers<[1], [0], [0], [1], [0, 0, 1, 1], [], []>} : vector<16x32xf32>, vector<32x128xf32>, vector<16x128xf32> -> vector<16x128xf32>
    %c0_3 = arith.constant 0 : index
    %c0_4 = arith.constant 0 : index
    %9 = vector.load %arg4[%c0_3, %c0_4] : memref<1x128xf32, #tpu.memory_space<vmem>>, vector<1x128xf32>
    %10 = vector.broadcast %9 : vector<1x128xf32> to vector<16x128xf32>
    %11 = arith.addf %8, %10 : vector<16x128xf32>
    %c0_5 = arith.constant 0 : index
    %c0_6 = arith.constant 0 : index
    %12 = vector.load %arg11[%c0_5, %c0_6] : memref<16x128xf32, #tpu.memory_space<vmem>>, vector<16x128xf32>
    tpu.vector_store %arg11[%c0_5, %c0_6], %11 {strides = array<i32>} : memref<16x128xf32, #tpu.memory_space<vmem>>, vector<16x128xf32>,
    %c0_7 = arith.constant 0 : index
    %c0_8 = arith.constant 0 : index
    %13 = vector.load %arg3[%c0_7, %c0_8] : memref<32x128xf32, #tpu.memory_space<vmem>>, vector<32x128xf32>
    %cst_9 = arith.constant 0.000000e+00 : f32
    %14 = vector.broadcast %cst_9 : f32 to vector<2x32xf32>
    %cst_10 = arith.constant 0.000000e+00 : f32
    %15 = vector.broadcast %cst_10 : f32 to vector<2x32xf32>
    %c0_i32 = arith.constant 0 : i32
    %c2_i32 = arith.constant 2 : i32
    %16 = arith.muli %c0_i32, %c2_i32 : i32
    %17 = tpu.assume_multiple %16, 2 : i32
    %18 = arith.index_cast %17 : i32 to index
    %c0_11 = arith.constant 0 : index
    %19 = vector.load %arg11[%18, %c0_11] : memref<16x128xf32, #tpu.memory_space<vmem>>, vector<2x128xf32>
    %cst_12 = arith.constant dense<0.000000e+00> : vector<2x128xf32>
    %20 = tpu.matmul %14, %13, %cst_12 {dimension_numbers = #tpu.dot_dimension_numbers<[1], [0], [0], [1], [0, 0, 1, 1], [], []>} : vector<2x32xf32>, vector<32x128xf32>, vector<2x128xf32> -> vector<2x128xf32>
    %21 = arith.addf %19, %20 : vector<2x128xf32>
    %22 = arith.negf %21 : vector<2x128xf32>
    %23 = math.exp %22 : vector<2x128xf32>
    %cst_13 = arith.constant 1.000000e+00 : f32
    %24 = vector.broadcast %cst_13 : f32 to vector<2x128xf32>
    %25 = arith.addf %24, %23 : vector<2x128xf32>
    %26 = arith.divf %24, %25 : vector<2x128xf32>
    %27 = math.tanh %21 : vector<2x128xf32>
    %28 = arith.select %5, %27, %26 : vector<2x128xi1>, vector<2x128xf32>
    %29 = vector.extract_strided_slice %28 {offsets = [0, 0], sizes = [2, 32], strides = [1, 1]} : vector<2x128xf32> to vector<2x32xf32>
    %30 = vector.extract_strided_slice %28 {offsets = [0, 32], sizes = [2, 32], strides = [1, 1]} : vector<2x128xf32> to vector<2x32xf32>
    %31 = vector.extract_strided_slice %28 {offsets = [0, 64], sizes = [2, 32], strides = [1, 1]} : vector<2x128xf32> to vector<2x32xf32>
    %32 = vector.extract_strided_slice %28 {offsets = [0, 96], sizes = [2, 32], strides = [1, 1]} : vector<2x128xf32> to vector<2x32xf32>
    %33 = arith.mulf %30, %15 : vector<2x32xf32>
    %34 = arith.mulf %29, %31 : vector<2x32xf32>
    %35 = arith.addf %33, %34 : vector<2x32xf32>
    %36 = math.tanh %35 : vector<2x32xf32>
    %37 = arith.mulf %32, %36 : vector<2x32xf32>
    %38 = arith.index_cast %17 : i32 to index
    %c0_14 = arith.constant 0 : index
    %39 = vector.load %arg12[%38, %c0_14] : memref<16x32xf32, #tpu.memory_space<vmem>>, vector<2x32xf32>
    tpu.vector_store %arg12[%38, %c0_14], %37 {strides = array<i32>} : memref<16x32xf32, #tpu.memory_space<vmem>>, vector<2x32xf32>,
    %c1_i32 = arith.constant 1 : i32
    %c2_i32_15 = arith.constant 2 : i32
    %40 = arith.muli %c1_i32, %c2_i32_15 : i32
    %41 = tpu.assume_multiple %40, 2 : i32
    %42 = arith.index_cast %41 : i32 to index
    %c0_16 = arith.constant 0 : index
    %43 = vector.load %arg11[%42, %c0_16] : memref<16x128xf32, #tpu.memory_space<vmem>>, vector<2x128xf32>
    %cst_17 = arith.constant dense<0.000000e+00> : vector<2x128xf32>
    %44 = tpu.matmul %37, %13, %cst_17 {dimension_numbers = #tpu.dot_dimension_numbers<[1], [0], [0], [1], [0, 0, 1, 1], [], []>} : vector<2x32xf32>, vector<32x128xf32>, vector<2x128xf32> -> vector<2x128xf32>
    %45 = arith.addf %43, %44 : vector<2x128xf32>
    %46 = arith.negf %45 : vector<2x128xf32>
    %47 = math.exp %46 : vector<2x128xf32>
    %cst_18 = arith.constant 1.000000e+00 : f32
    %48 = vector.broadcast %cst_18 : f32 to vector<2x128xf32>
    %49 = arith.addf %48, %47 : vector<2x128xf32>
    %50 = arith.divf %48, %49 : vector<2x128xf32>
    %51 = math.tanh %45 : vector<2x128xf32>
    %52 = arith.select %5, %51, %50 : vector<2x128xi1>, vector<2x128xf32>
    %53 = vector.extract_strided_slice %52 {offsets = [0, 0], sizes = [2, 32], strides = [1, 1]} : vector<2x128xf32> to vector<2x32xf32>
    %54 = vector.extract_strided_slice %52 {offsets = [0, 32], sizes = [2, 32], strides = [1, 1]} : vector<2x128xf32> to vector<2x32xf32>
    %55 = vector.extract_strided_slice %52 {offsets = [0, 64], sizes = [2, 32], strides = [1, 1]} : vector<2x128xf32> to vector<2x32xf32>
    %56 = vector.extract_strided_slice %52 {offsets = [0, 96], sizes = [2, 32], strides = [1, 1]} : vector<2x128xf32> to vector<2x32xf32>
    %57 = arith.mulf %54, %35 : vector<2x32xf32>
    %58 = arith.mulf %53, %55 : vector<2x32xf32>
    %59 = arith.addf %57, %58 : vector<2x32xf32>
    %60 = math.tanh %59 : vector<2x32xf32>
    %61 = arith.mulf %56, %60 : vector<2x32xf32>
    %62 = arith.index_cast %41 : i32 to index
    %c0_19 = arith.constant 0 : index
    %63 = vector.load %arg12[%62, %c0_19] : memref<16x32xf32, #tpu.memory_space<vmem>>, vector<2x32xf32>
    tpu.vector_store %arg12[%62, %c0_19], %61 {strides = array<i32>} : memref<16x32xf32, #tpu.memory_space<vmem>>, vector<2x32xf32>,
    %c2_i32_20 = arith.constant 2 : i32
    %c2_i32_21 = arith.constant 2 : i32
    %64 = arith.muli %c2_i32_20, %c2_i32_21 : i32
    %65 = tpu.assume_multiple %64, 2 : i32
    %66 = arith.index_cast %65 : i32 to index
    %c0_22 = arith.constant 0 : index
    %67 = vector.load %arg11[%66, %c0_22] : memref<16x128xf32, #tpu.memory_space<vmem>>, vector<2x128xf32>
    %cst_23 = arith.constant dense<0.000000e+00> : vector<2x128xf32>
    %68 = tpu.matmul %61, %13, %cst_23 {dimension_numbers = #tpu.dot_dimension_numbers<[1], [0], [0], [1], [0, 0, 1, 1], [], []>} : vector<2x32xf32>, vector<32x128xf32>, vector<2x128xf32> -> vector<2x128xf32>
    %69 = arith.addf %67, %68 : vector<2x128xf32>
    %70 = arith.negf %69 : vector<2x128xf32>
    %71 = math.exp %70 : vector<2x128xf32>
    %cst_24 = arith.constant 1.000000e+00 : f32
    %72 = vector.broadcast %cst_24 : f32 to vector<2x128xf32>
    %73 = arith.addf %72, %71 : vector<2x128xf32>
    %74 = arith.divf %72, %73 : vector<2x128xf32>
    %75 = math.tanh %69 : vector<2x128xf32>
    %76 = arith.select %5, %75, %74 : vector<2x128xi1>, vector<2x128xf32>
    %77 = vector.extract_strided_slice %76 {offsets = [0, 0], sizes = [2, 32], strides = [1, 1]} : vector<2x128xf32> to vector<2x32xf32>
    %78 = vector.extract_strided_slice %76 {offsets = [0, 32], sizes = [2, 32], strides = [1, 1]} : vector<2x128xf32> to vector<2x32xf32>
    %79 = vector.extract_strided_slice %76 {offsets = [0, 64], sizes = [2, 32], strides = [1, 1]} : vector<2x128xf32> to vector<2x32xf32>
    %80 = vector.extract_strided_slice %76 {offsets = [0, 96], sizes = [2, 32], strides = [1, 1]} : vector<2x128xf32> to vector<2x32xf32>
    %81 = arith.mulf %78, %59 : vector<2x32xf32>
    %82 = arith.mulf %77, %79 : vector<2x32xf32>
    %83 = arith.addf %81, %82 : vector<2x32xf32>
    %84 = math.tanh %83 : vector<2x32xf32>
    %85 = arith.mulf %80, %84 : vector<2x32xf32>
    %86 = arith.index_cast %65 : i32 to index
    %c0_25 = arith.constant 0 : index
    %87 = vector.load %arg12[%86, %c0_25] : memref<16x32xf32, #tpu.memory_space<vmem>>, vector<2x32xf32>
    tpu.vector_store %arg12[%86, %c0_25], %85 {strides = array<i32>} : memref<16x32xf32, #tpu.memory_space<vmem>>, vector<2x32xf32>,
    %c3_i32 = arith.constant 3 : i32
    %c2_i32_26 = arith.constant 2 : i32
    %88 = arith.muli %c3_i32, %c2_i32_26 : i32
    %89 = tpu.assume_multiple %88, 2 : i32
    %90 = arith.index_cast %89 : i32 to index
    %c0_27 = arith.constant 0 : index
    %91 = vector.load %arg11[%90, %c0_27] : memref<16x128xf32, #tpu.memory_space<vmem>>, vector<2x128xf32>
    %cst_28 = arith.constant dense<0.000000e+00> : vector<2x128xf32>
    %92 = tpu.matmul %85, %13, %cst_28 {dimension_numbers = #tpu.dot_dimension_numbers<[1], [0], [0], [1], [0, 0, 1, 1], [], []>} : vector<2x32xf32>, vector<32x128xf32>, vector<2x128xf32> -> vector<2x128xf32>
    %93 = arith.addf %91, %92 : vector<2x128xf32>
    %94 = arith.negf %93 : vector<2x128xf32>
    %95 = math.exp %94 : vector<2x128xf32>
    %cst_29 = arith.constant 1.000000e+00 : f32
    %96 = vector.broadcast %cst_29 : f32 to vector<2x128xf32>
    %97 = arith.addf %96, %95 : vector<2x128xf32>
    %98 = arith.divf %96, %97 : vector<2x128xf32>
    %99 = math.tanh %93 : vector<2x128xf32>
    %100 = arith.select %5, %99, %98 : vector<2x128xi1>, vector<2x128xf32>
    %101 = vector.extract_strided_slice %100 {offsets = [0, 0], sizes = [2, 32], strides = [1, 1]} : vector<2x128xf32> to vector<2x32xf32>
    %102 = vector.extract_strided_slice %100 {offsets = [0, 32], sizes = [2, 32], strides = [1, 1]} : vector<2x128xf32> to vector<2x32xf32>
    %103 = vector.extract_strided_slice %100 {offsets = [0, 64], sizes = [2, 32], strides = [1, 1]} : vector<2x128xf32> to vector<2x32xf32>
    %104 = vector.extract_strided_slice %100 {offsets = [0, 96], sizes = [2, 32], strides = [1, 1]} : vector<2x128xf32> to vector<2x32xf32>
    %105 = arith.mulf %102, %83 : vector<2x32xf32>
    %106 = arith.mulf %101, %103 : vector<2x32xf32>
    %107 = arith.addf %105, %106 : vector<2x32xf32>
    %108 = math.tanh %107 : vector<2x32xf32>
    %109 = arith.mulf %104, %108 : vector<2x32xf32>
    %110 = arith.index_cast %89 : i32 to index
    %c0_30 = arith.constant 0 : index
    %111 = vector.load %arg12[%110, %c0_30] : memref<16x32xf32, #tpu.memory_space<vmem>>, vector<2x32xf32>
    tpu.vector_store %arg12[%110, %c0_30], %109 {strides = array<i32>} : memref<16x32xf32, #tpu.memory_space<vmem>>, vector<2x32xf32>,
    %c4_i32 = arith.constant 4 : i32
    %c2_i32_31 = arith.constant 2 : i32
    %112 = arith.muli %c4_i32, %c2_i32_31 : i32
    %113 = tpu.assume_multiple %112, 2 : i32
    %114 = arith.index_cast %113 : i32 to index
    %c0_32 = arith.constant 0 : index
    %115 = vector.load %arg11[%114, %c0_32] : memref<16x128xf32, #tpu.memory_space<vmem>>, vector<2x128xf32>
    %cst_33 = arith.constant dense<0.000000e+00> : vector<2x128xf32>
    %116 = tpu.matmul %109, %13, %cst_33 {dimension_numbers = #tpu.dot_dimension_numbers<[1], [0], [0], [1], [0, 0, 1, 1], [], []>} : vector<2x32xf32>, vector<32x128xf32>, vector<2x128xf32> -> vector<2x128xf32>
    %117 = arith.addf %115, %116 : vector<2x128xf32>
    %118 = arith.negf %117 : vector<2x128xf32>
    %119 = math.exp %118 : vector<2x128xf32>
    %cst_34 = arith.constant 1.000000e+00 : f32
    %120 = vector.broadcast %cst_34 : f32 to vector<2x128xf32>
    %121 = arith.addf %120, %119 : vector<2x128xf32>
    %122 = arith.divf %120, %121 : vector<2x128xf32>
    %123 = math.tanh %117 : vector<2x128xf32>
    %124 = arith.select %5, %123, %122 : vector<2x128xi1>, vector<2x128xf32>
    %125 = vector.extract_strided_slice %124 {offsets = [0, 0], sizes = [2, 32], strides = [1, 1]} : vector<2x128xf32> to vector<2x32xf32>
    %126 = vector.extract_strided_slice %124 {offsets = [0, 32], sizes = [2, 32], strides = [1, 1]} : vector<2x128xf32> to vector<2x32xf32>
    %127 = vector.extract_strided_slice %124 {offsets = [0, 64], sizes = [2, 32], strides = [1, 1]} : vector<2x128xf32> to vector<2x32xf32>
    %128 = vector.extract_strided_slice %124 {offsets = [0, 96], sizes = [2, 32], strides = [1, 1]} : vector<2x128xf32> to vector<2x32xf32>
    %129 = arith.mulf %126, %107 : vector<2x32xf32>
    %130 = arith.mulf %125, %127 : vector<2x32xf32>
    %131 = arith.addf %129, %130 : vector<2x32xf32>
    %132 = math.tanh %131 : vector<2x32xf32>
    %133 = arith.mulf %128, %132 : vector<2x32xf32>
    %134 = arith.index_cast %113 : i32 to index
    %c0_35 = arith.constant 0 : index
    %135 = vector.load %arg12[%134, %c0_35] : memref<16x32xf32, #tpu.memory_space<vmem>>, vector<2x32xf32>
    tpu.vector_store %arg12[%134, %c0_35], %133 {strides = array<i32>} : memref<16x32xf32, #tpu.memory_space<vmem>>, vector<2x32xf32>,
    %c5_i32 = arith.constant 5 : i32
    %c2_i32_36 = arith.constant 2 : i32
    %136 = arith.muli %c5_i32, %c2_i32_36 : i32
    %137 = tpu.assume_multiple %136, 2 : i32
    %138 = arith.index_cast %137 : i32 to index
    %c0_37 = arith.constant 0 : index
    %139 = vector.load %arg11[%138, %c0_37] : memref<16x128xf32, #tpu.memory_space<vmem>>, vector<2x128xf32>
    %cst_38 = arith.constant dense<0.000000e+00> : vector<2x128xf32>
    %140 = tpu.matmul %133, %13, %cst_38 {dimension_numbers = #tpu.dot_dimension_numbers<[1], [0], [0], [1], [0, 0, 1, 1], [], []>} : vector<2x32xf32>, vector<32x128xf32>, vector<2x128xf32> -> vector<2x128xf32>
    %141 = arith.addf %139, %140 : vector<2x128xf32>
    %142 = arith.negf %141 : vector<2x128xf32>
    %143 = math.exp %142 : vector<2x128xf32>
    %cst_39 = arith.constant 1.000000e+00 : f32
    %144 = vector.broadcast %cst_39 : f32 to vector<2x128xf32>
    %145 = arith.addf %144, %143 : vector<2x128xf32>
    %146 = arith.divf %144, %145 : vector<2x128xf32>
    %147 = math.tanh %141 : vector<2x128xf32>
    %148 = arith.select %5, %147, %146 : vector<2x128xi1>, vector<2x128xf32>
    %149 = vector.extract_strided_slice %148 {offsets = [0, 0], sizes = [2, 32], strides = [1, 1]} : vector<2x128xf32> to vector<2x32xf32>
    %150 = vector.extract_strided_slice %148 {offsets = [0, 32], sizes = [2, 32], strides = [1, 1]} : vector<2x128xf32> to vector<2x32xf32>
    %151 = vector.extract_strided_slice %148 {offsets = [0, 64], sizes = [2, 32], strides = [1, 1]} : vector<2x128xf32> to vector<2x32xf32>
    %152 = vector.extract_strided_slice %148 {offsets = [0, 96], sizes = [2, 32], strides = [1, 1]} : vector<2x128xf32> to vector<2x32xf32>
    %153 = arith.mulf %150, %131 : vector<2x32xf32>
    %154 = arith.mulf %149, %151 : vector<2x32xf32>
    %155 = arith.addf %153, %154 : vector<2x32xf32>
    %156 = math.tanh %155 : vector<2x32xf32>
    %157 = arith.mulf %152, %156 : vector<2x32xf32>
    %158 = arith.index_cast %137 : i32 to index
    %c0_40 = arith.constant 0 : index
    %159 = vector.load %arg12[%158, %c0_40] : memref<16x32xf32, #tpu.memory_space<vmem>>, vector<2x32xf32>
    tpu.vector_store %arg12[%158, %c0_40], %157 {strides = array<i32>} : memref<16x32xf32, #tpu.memory_space<vmem>>, vector<2x32xf32>,
    %c6_i32 = arith.constant 6 : i32
    %c2_i32_41 = arith.constant 2 : i32
    %160 = arith.muli %c6_i32, %c2_i32_41 : i32
    %161 = tpu.assume_multiple %160, 2 : i32
    %162 = arith.index_cast %161 : i32 to index
    %c0_42 = arith.constant 0 : index
    %163 = vector.load %arg11[%162, %c0_42] : memref<16x128xf32, #tpu.memory_space<vmem>>, vector<2x128xf32>
    %cst_43 = arith.constant dense<0.000000e+00> : vector<2x128xf32>
    %164 = tpu.matmul %157, %13, %cst_43 {dimension_numbers = #tpu.dot_dimension_numbers<[1], [0], [0], [1], [0, 0, 1, 1], [], []>} : vector<2x32xf32>, vector<32x128xf32>, vector<2x128xf32> -> vector<2x128xf32>
    %165 = arith.addf %163, %164 : vector<2x128xf32>
    %166 = arith.negf %165 : vector<2x128xf32>
    %167 = math.exp %166 : vector<2x128xf32>
    %cst_44 = arith.constant 1.000000e+00 : f32
    %168 = vector.broadcast %cst_44 : f32 to vector<2x128xf32>
    %169 = arith.addf %168, %167 : vector<2x128xf32>
    %170 = arith.divf %168, %169 : vector<2x128xf32>
    %171 = math.tanh %165 : vector<2x128xf32>
    %172 = arith.select %5, %171, %170 : vector<2x128xi1>, vector<2x128xf32>
    %173 = vector.extract_strided_slice %172 {offsets = [0, 0], sizes = [2, 32], strides = [1, 1]} : vector<2x128xf32> to vector<2x32xf32>
    %174 = vector.extract_strided_slice %172 {offsets = [0, 32], sizes = [2, 32], strides = [1, 1]} : vector<2x128xf32> to vector<2x32xf32>
    %175 = vector.extract_strided_slice %172 {offsets = [0, 64], sizes = [2, 32], strides = [1, 1]} : vector<2x128xf32> to vector<2x32xf32>
    %176 = vector.extract_strided_slice %172 {offsets = [0, 96], sizes = [2, 32], strides = [1, 1]} : vector<2x128xf32> to vector<2x32xf32>
    %177 = arith.mulf %174, %155 : vector<2x32xf32>
    %178 = arith.mulf %173, %175 : vector<2x32xf32>
    %179 = arith.addf %177, %178 : vector<2x32xf32>
    %180 = math.tanh %179 : vector<2x32xf32>
    %181 = arith.mulf %176, %180 : vector<2x32xf32>
    %182 = arith.index_cast %161 : i32 to index
    %c0_45 = arith.constant 0 : index
    %183 = vector.load %arg12[%182, %c0_45] : memref<16x32xf32, #tpu.memory_space<vmem>>, vector<2x32xf32>
    tpu.vector_store %arg12[%182, %c0_45], %181 {strides = array<i32>} : memref<16x32xf32, #tpu.memory_space<vmem>>, vector<2x32xf32>,
    %c7_i32 = arith.constant 7 : i32
    %c2_i32_46 = arith.constant 2 : i32
    %184 = arith.muli %c7_i32, %c2_i32_46 : i32
    %185 = tpu.assume_multiple %184, 2 : i32
    %186 = arith.index_cast %185 : i32 to index
    %c0_47 = arith.constant 0 : index
    %187 = vector.load %arg11[%186, %c0_47] : memref<16x128xf32, #tpu.memory_space<vmem>>, vector<2x128xf32>
    %cst_48 = arith.constant dense<0.000000e+00> : vector<2x128xf32>
    %188 = tpu.matmul %181, %13, %cst_48 {dimension_numbers = #tpu.dot_dimension_numbers<[1], [0], [0], [1], [0, 0, 1, 1], [], []>} : vector<2x32xf32>, vector<32x128xf32>, vector<2x128xf32> -> vector<2x128xf32>
    %189 = arith.addf %187, %188 : vector<2x128xf32>
    %190 = arith.negf %189 : vector<2x128xf32>
    %191 = math.exp %190 : vector<2x128xf32>
    %cst_49 = arith.constant 1.000000e+00 : f32
    %192 = vector.broadcast %cst_49 : f32 to vector<2x128xf32>
    %193 = arith.addf %192, %191 : vector<2x128xf32>
    %194 = arith.divf %192, %193 : vector<2x128xf32>
    %195 = math.tanh %189 : vector<2x128xf32>
    %196 = arith.select %5, %195, %194 : vector<2x128xi1>, vector<2x128xf32>
    %197 = vector.extract_strided_slice %196 {offsets = [0, 0], sizes = [2, 32], strides = [1, 1]} : vector<2x128xf32> to vector<2x32xf32>
    %198 = vector.extract_strided_slice %196 {offsets = [0, 32], sizes = [2, 32], strides = [1, 1]} : vector<2x128xf32> to vector<2x32xf32>
    %199 = vector.extract_strided_slice %196 {offsets = [0, 64], sizes = [2, 32], strides = [1, 1]} : vector<2x128xf32> to vector<2x32xf32>
    %200 = vector.extract_strided_slice %196 {offsets = [0, 96], sizes = [2, 32], strides = [1, 1]} : vector<2x128xf32> to vector<2x32xf32>
    %201 = arith.mulf %198, %179 : vector<2x32xf32>
    %202 = arith.mulf %197, %199 : vector<2x32xf32>
    %203 = arith.addf %201, %202 : vector<2x32xf32>
    %204 = math.tanh %203 : vector<2x32xf32>
    %205 = arith.mulf %200, %204 : vector<2x32xf32>
    %206 = arith.index_cast %185 : i32 to index
    %c0_50 = arith.constant 0 : index
    %207 = vector.load %arg12[%206, %c0_50] : memref<16x32xf32, #tpu.memory_space<vmem>>, vector<2x32xf32>
    tpu.vector_store %arg12[%206, %c0_50], %205 {strides = array<i32>} : memref<16x32xf32, #tpu.memory_space<vmem>>, vector<2x32xf32>,
    %c8_i32 = arith.constant 8 : i32
    %c0_51 = arith.constant 0 : index
    %c0_52 = arith.constant 0 : index
    %208 = vector.load %arg12[%c0_51, %c0_52] : memref<16x32xf32, #tpu.memory_space<vmem>>, vector<16x32xf32>
    %c0_53 = arith.constant 0 : index
    %c0_54 = arith.constant 0 : index
    %209 = vector.load %arg5[%c0_53, %c0_54] : memref<32x128xf32, #tpu.memory_space<vmem>>, vector<32x128xf32>
    %cst_55 = arith.constant dense<0.000000e+00> : vector<16x128xf32>
    %210 = tpu.matmul %208, %209, %cst_55 {dimension_numbers = #tpu.dot_dimension_numbers<[1], [0], [0], [1], [0, 0, 1, 1], [], []>} : vector<16x32xf32>, vector<32x128xf32>, vector<16x128xf32> -> vector<16x128xf32>
    %c0_56 = arith.constant 0 : index
    %c0_57 = arith.constant 0 : index
    %211 = vector.load %arg7[%c0_56, %c0_57] : memref<1x128xf32, #tpu.memory_space<vmem>>, vector<1x128xf32>
    %212 = vector.broadcast %211 : vector<1x128xf32> to vector<16x128xf32>
    %213 = arith.addf %210, %212 : vector<16x128xf32>
    %c0_58 = arith.constant 0 : index
    %c0_59 = arith.constant 0 : index
    %214 = vector.load %arg11[%c0_58, %c0_59] : memref<16x128xf32, #tpu.memory_space<vmem>>, vector<16x128xf32>
    tpu.vector_store %arg11[%c0_58, %c0_59], %213 {strides = array<i32>} : memref<16x128xf32, #tpu.memory_space<vmem>>, vector<16x128xf32>,
    %c0_60 = arith.constant 0 : index
    %c0_61 = arith.constant 0 : index
    %215 = vector.load %arg6[%c0_60, %c0_61] : memref<32x128xf32, #tpu.memory_space<vmem>>, vector<32x128xf32>
    %cst_62 = arith.constant 0.000000e+00 : f32
    %216 = vector.broadcast %cst_62 : f32 to vector<2x32xf32>
    %cst_63 = arith.constant 0.000000e+00 : f32
    %217 = vector.broadcast %cst_63 : f32 to vector<2x32xf32>
    %c0_i32_64 = arith.constant 0 : i32
    %c2_i32_65 = arith.constant 2 : i32
    %218 = arith.muli %c0_i32_64, %c2_i32_65 : i32
    %219 = tpu.assume_multiple %218, 2 : i32
    %220 = arith.index_cast %219 : i32 to index
    %c0_66 = arith.constant 0 : index
    %221 = vector.load %arg11[%220, %c0_66] : memref<16x128xf32, #tpu.memory_space<vmem>>, vector<2x128xf32>
    %cst_67 = arith.constant dense<0.000000e+00> : vector<2x128xf32>
    %222 = tpu.matmul %216, %215, %cst_67 {dimension_numbers = #tpu.dot_dimension_numbers<[1], [0], [0], [1], [0, 0, 1, 1], [], []>} : vector<2x32xf32>, vector<32x128xf32>, vector<2x128xf32> -> vector<2x128xf32>
    %223 = arith.addf %221, %222 : vector<2x128xf32>
    %224 = arith.negf %223 : vector<2x128xf32>
    %225 = math.exp %224 : vector<2x128xf32>
    %cst_68 = arith.constant 1.000000e+00 : f32
    %226 = vector.broadcast %cst_68 : f32 to vector<2x128xf32>
    %227 = arith.addf %226, %225 : vector<2x128xf32>
    %228 = arith.divf %226, %227 : vector<2x128xf32>
    %229 = math.tanh %223 : vector<2x128xf32>
    %230 = arith.select %5, %229, %228 : vector<2x128xi1>, vector<2x128xf32>
    %231 = vector.extract_strided_slice %230 {offsets = [0, 0], sizes = [2, 32], strides = [1, 1]} : vector<2x128xf32> to vector<2x32xf32>
    %232 = vector.extract_strided_slice %230 {offsets = [0, 32], sizes = [2, 32], strides = [1, 1]} : vector<2x128xf32> to vector<2x32xf32>
    %233 = vector.extract_strided_slice %230 {offsets = [0, 64], sizes = [2, 32], strides = [1, 1]} : vector<2x128xf32> to vector<2x32xf32>
    %234 = vector.extract_strided_slice %230 {offsets = [0, 96], sizes = [2, 32], strides = [1, 1]} : vector<2x128xf32> to vector<2x32xf32>
    %235 = arith.mulf %232, %217 : vector<2x32xf32>
    %236 = arith.mulf %231, %233 : vector<2x32xf32>
    %237 = arith.addf %235, %236 : vector<2x32xf32>
    %238 = math.tanh %237 : vector<2x32xf32>
    %239 = arith.mulf %234, %238 : vector<2x32xf32>
    %240 = vector.extract_strided_slice %239 {offsets = [0, 0], sizes = [1, 32], strides = [1, 1]} : vector<2x32xf32> to vector<1x32xf32>
    %c0_i32_69 = arith.constant 0 : i32
    %241 = arith.addi %c0_i32_69, %c0_i32_64 : i32
    %242 = arith.index_cast %241 : i32 to index
    %c0_70 = arith.constant 0 : index
    %243 = vector.load %arg13[%242, %c0_70] : memref<16x32xf32, #tpu.memory_space<vmem>>, vector<1x32xf32>
    tpu.vector_store %arg13[%242, %c0_70], %240 {strides = array<i32>} : memref<16x32xf32, #tpu.memory_space<vmem>>, vector<1x32xf32>,
    %244 = vector.extract_strided_slice %239 {offsets = [1, 0], sizes = [1, 32], strides = [1, 1]} : vector<2x32xf32> to vector<1x32xf32>
    %c8_i32_71 = arith.constant 8 : i32
    %245 = arith.addi %c8_i32_71, %c0_i32_64 : i32
    %246 = arith.index_cast %245 : i32 to index
    %c0_72 = arith.constant 0 : index
    %247 = vector.load %arg13[%246, %c0_72] : memref<16x32xf32, #tpu.memory_space<vmem>>, vector<1x32xf32>
    tpu.vector_store %arg13[%246, %c0_72], %244 {strides = array<i32>} : memref<16x32xf32, #tpu.memory_space<vmem>>, vector<1x32xf32>,
    %c1_i32_73 = arith.constant 1 : i32
    %c2_i32_74 = arith.constant 2 : i32
    %248 = arith.muli %c1_i32_73, %c2_i32_74 : i32
    %249 = tpu.assume_multiple %248, 2 : i32
    %250 = arith.index_cast %249 : i32 to index
    %c0_75 = arith.constant 0 : index
    %251 = vector.load %arg11[%250, %c0_75] : memref<16x128xf32, #tpu.memory_space<vmem>>, vector<2x128xf32>
    %cst_76 = arith.constant dense<0.000000e+00> : vector<2x128xf32>
    %252 = tpu.matmul %239, %215, %cst_76 {dimension_numbers = #tpu.dot_dimension_numbers<[1], [0], [0], [1], [0, 0, 1, 1], [], []>} : vector<2x32xf32>, vector<32x128xf32>, vector<2x128xf32> -> vector<2x128xf32>
    %253 = arith.addf %251, %252 : vector<2x128xf32>
    %254 = arith.negf %253 : vector<2x128xf32>
    %255 = math.exp %254 : vector<2x128xf32>
    %cst_77 = arith.constant 1.000000e+00 : f32
    %256 = vector.broadcast %cst_77 : f32 to vector<2x128xf32>
    %257 = arith.addf %256, %255 : vector<2x128xf32>
    %258 = arith.divf %256, %257 : vector<2x128xf32>
    %259 = math.tanh %253 : vector<2x128xf32>
    %260 = arith.select %5, %259, %258 : vector<2x128xi1>, vector<2x128xf32>
    %261 = vector.extract_strided_slice %260 {offsets = [0, 0], sizes = [2, 32], strides = [1, 1]} : vector<2x128xf32> to vector<2x32xf32>
    %262 = vector.extract_strided_slice %260 {offsets = [0, 32], sizes = [2, 32], strides = [1, 1]} : vector<2x128xf32> to vector<2x32xf32>
    %263 = vector.extract_strided_slice %260 {offsets = [0, 64], sizes = [2, 32], strides = [1, 1]} : vector<2x128xf32> to vector<2x32xf32>
    %264 = vector.extract_strided_slice %260 {offsets = [0, 96], sizes = [2, 32], strides = [1, 1]} : vector<2x128xf32> to vector<2x32xf32>
    %265 = arith.mulf %262, %237 : vector<2x32xf32>
    %266 = arith.mulf %261, %263 : vector<2x32xf32>
    %267 = arith.addf %265, %266 : vector<2x32xf32>
    %268 = math.tanh %267 : vector<2x32xf32>
    %269 = arith.mulf %264, %268 : vector<2x32xf32>
    %270 = vector.extract_strided_slice %269 {offsets = [0, 0], sizes = [1, 32], strides = [1, 1]} : vector<2x32xf32> to vector<1x32xf32>
    %c0_i32_78 = arith.constant 0 : i32
    %271 = arith.addi %c0_i32_78, %c1_i32_73 : i32
    %272 = arith.index_cast %271 : i32 to index
    %c0_79 = arith.constant 0 : index
    %273 = vector.load %arg13[%272, %c0_79] : memref<16x32xf32, #tpu.memory_space<vmem>>, vector<1x32xf32>
    tpu.vector_store %arg13[%272, %c0_79], %270 {strides = array<i32>} : memref<16x32xf32, #tpu.memory_space<vmem>>, vector<1x32xf32>,
    %274 = vector.extract_strided_slice %269 {offsets = [1, 0], sizes = [1, 32], strides = [1, 1]} : vector<2x32xf32> to vector<1x32xf32>
    %c8_i32_80 = arith.constant 8 : i32
    %275 = arith.addi %c8_i32_80, %c1_i32_73 : i32
    %276 = arith.index_cast %275 : i32 to index
    %c0_81 = arith.constant 0 : index
    %277 = vector.load %arg13[%276, %c0_81] : memref<16x32xf32, #tpu.memory_space<vmem>>, vector<1x32xf32>
    tpu.vector_store %arg13[%276, %c0_81], %274 {strides = array<i32>} : memref<16x32xf32, #tpu.memory_space<vmem>>, vector<1x32xf32>,
    %c2_i32_82 = arith.constant 2 : i32
    %c2_i32_83 = arith.constant 2 : i32
    %278 = arith.muli %c2_i32_82, %c2_i32_83 : i32
    %279 = tpu.assume_multiple %278, 2 : i32
    %280 = arith.index_cast %279 : i32 to index
    %c0_84 = arith.constant 0 : index
    %281 = vector.load %arg11[%280, %c0_84] : memref<16x128xf32, #tpu.memory_space<vmem>>, vector<2x128xf32>
    %cst_85 = arith.constant dense<0.000000e+00> : vector<2x128xf32>
    %282 = tpu.matmul %269, %215, %cst_85 {dimension_numbers = #tpu.dot_dimension_numbers<[1], [0], [0], [1], [0, 0, 1, 1], [], []>} : vector<2x32xf32>, vector<32x128xf32>, vector<2x128xf32> -> vector<2x128xf32>
    %283 = arith.addf %281, %282 : vector<2x128xf32>
    %284 = arith.negf %283 : vector<2x128xf32>
    %285 = math.exp %284 : vector<2x128xf32>
    %cst_86 = arith.constant 1.000000e+00 : f32
    %286 = vector.broadcast %cst_86 : f32 to vector<2x128xf32>
    %287 = arith.addf %286, %285 : vector<2x128xf32>
    %288 = arith.divf %286, %287 : vector<2x128xf32>
    %289 = math.tanh %283 : vector<2x128xf32>
    %290 = arith.select %5, %289, %288 : vector<2x128xi1>, vector<2x128xf32>
    %291 = vector.extract_strided_slice %290 {offsets = [0, 0], sizes = [2, 32], strides = [1, 1]} : vector<2x128xf32> to vector<2x32xf32>
    %292 = vector.extract_strided_slice %290 {offsets = [0, 32], sizes = [2, 32], strides = [1, 1]} : vector<2x128xf32> to vector<2x32xf32>
    %293 = vector.extract_strided_slice %290 {offsets = [0, 64], sizes = [2, 32], strides = [1, 1]} : vector<2x128xf32> to vector<2x32xf32>
    %294 = vector.extract_strided_slice %290 {offsets = [0, 96], sizes = [2, 32], strides = [1, 1]} : vector<2x128xf32> to vector<2x32xf32>
    %295 = arith.mulf %292, %267 : vector<2x32xf32>
    %296 = arith.mulf %291, %293 : vector<2x32xf32>
    %297 = arith.addf %295, %296 : vector<2x32xf32>
    %298 = math.tanh %297 : vector<2x32xf32>
    %299 = arith.mulf %294, %298 : vector<2x32xf32>
    %300 = vector.extract_strided_slice %299 {offsets = [0, 0], sizes = [1, 32], strides = [1, 1]} : vector<2x32xf32> to vector<1x32xf32>
    %c0_i32_87 = arith.constant 0 : i32
    %301 = arith.addi %c0_i32_87, %c2_i32_82 : i32
    %302 = arith.index_cast %301 : i32 to index
    %c0_88 = arith.constant 0 : index
    %303 = vector.load %arg13[%302, %c0_88] : memref<16x32xf32, #tpu.memory_space<vmem>>, vector<1x32xf32>
    tpu.vector_store %arg13[%302, %c0_88], %300 {strides = array<i32>} : memref<16x32xf32, #tpu.memory_space<vmem>>, vector<1x32xf32>,
    %304 = vector.extract_strided_slice %299 {offsets = [1, 0], sizes = [1, 32], strides = [1, 1]} : vector<2x32xf32> to vector<1x32xf32>
    %c8_i32_89 = arith.constant 8 : i32
    %305 = arith.addi %c8_i32_89, %c2_i32_82 : i32
    %306 = arith.index_cast %305 : i32 to index
    %c0_90 = arith.constant 0 : index
    %307 = vector.load %arg13[%306, %c0_90] : memref<16x32xf32, #tpu.memory_space<vmem>>, vector<1x32xf32>
    tpu.vector_store %arg13[%306, %c0_90], %304 {strides = array<i32>} : memref<16x32xf32, #tpu.memory_space<vmem>>, vector<1x32xf32>,
    %c3_i32_91 = arith.constant 3 : i32
    %c2_i32_92 = arith.constant 2 : i32
    %308 = arith.muli %c3_i32_91, %c2_i32_92 : i32
    %309 = tpu.assume_multiple %308, 2 : i32
    %310 = arith.index_cast %309 : i32 to index
    %c0_93 = arith.constant 0 : index
    %311 = vector.load %arg11[%310, %c0_93] : memref<16x128xf32, #tpu.memory_space<vmem>>, vector<2x128xf32>
    %cst_94 = arith.constant dense<0.000000e+00> : vector<2x128xf32>
    %312 = tpu.matmul %299, %215, %cst_94 {dimension_numbers = #tpu.dot_dimension_numbers<[1], [0], [0], [1], [0, 0, 1, 1], [], []>} : vector<2x32xf32>, vector<32x128xf32>, vector<2x128xf32> -> vector<2x128xf32>
    %313 = arith.addf %311, %312 : vector<2x128xf32>
    %314 = arith.negf %313 : vector<2x128xf32>
    %315 = math.exp %314 : vector<2x128xf32>
    %cst_95 = arith.constant 1.000000e+00 : f32
    %316 = vector.broadcast %cst_95 : f32 to vector<2x128xf32>
    %317 = arith.addf %316, %315 : vector<2x128xf32>
    %318 = arith.divf %316, %317 : vector<2x128xf32>
    %319 = math.tanh %313 : vector<2x128xf32>
    %320 = arith.select %5, %319, %318 : vector<2x128xi1>, vector<2x128xf32>
    %321 = vector.extract_strided_slice %320 {offsets = [0, 0], sizes = [2, 32], strides = [1, 1]} : vector<2x128xf32> to vector<2x32xf32>
    %322 = vector.extract_strided_slice %320 {offsets = [0, 32], sizes = [2, 32], strides = [1, 1]} : vector<2x128xf32> to vector<2x32xf32>
    %323 = vector.extract_strided_slice %320 {offsets = [0, 64], sizes = [2, 32], strides = [1, 1]} : vector<2x128xf32> to vector<2x32xf32>
    %324 = vector.extract_strided_slice %320 {offsets = [0, 96], sizes = [2, 32], strides = [1, 1]} : vector<2x128xf32> to vector<2x32xf32>
    %325 = arith.mulf %322, %297 : vector<2x32xf32>
    %326 = arith.mulf %321, %323 : vector<2x32xf32>
    %327 = arith.addf %325, %326 : vector<2x32xf32>
    %328 = math.tanh %327 : vector<2x32xf32>
    %329 = arith.mulf %324, %328 : vector<2x32xf32>
    %330 = vector.extract_strided_slice %329 {offsets = [0, 0], sizes = [1, 32], strides = [1, 1]} : vector<2x32xf32> to vector<1x32xf32>
    %c0_i32_96 = arith.constant 0 : i32
    %331 = arith.addi %c0_i32_96, %c3_i32_91 : i32
    %332 = arith.index_cast %331 : i32 to index
    %c0_97 = arith.constant 0 : index
    %333 = vector.load %arg13[%332, %c0_97] : memref<16x32xf32, #tpu.memory_space<vmem>>, vector<1x32xf32>
    tpu.vector_store %arg13[%332, %c0_97], %330 {strides = array<i32>} : memref<16x32xf32, #tpu.memory_space<vmem>>, vector<1x32xf32>,
    %334 = vector.extract_strided_slice %329 {offsets = [1, 0], sizes = [1, 32], strides = [1, 1]} : vector<2x32xf32> to vector<1x32xf32>
    %c8_i32_98 = arith.constant 8 : i32
    %335 = arith.addi %c8_i32_98, %c3_i32_91 : i32
    %336 = arith.index_cast %335 : i32 to index
    %c0_99 = arith.constant 0 : index
    %337 = vector.load %arg13[%336, %c0_99] : memref<16x32xf32, #tpu.memory_space<vmem>>, vector<1x32xf32>
    tpu.vector_store %arg13[%336, %c0_99], %334 {strides = array<i32>} : memref<16x32xf32, #tpu.memory_space<vmem>>, vector<1x32xf32>,
    %c4_i32_100 = arith.constant 4 : i32
    %c2_i32_101 = arith.constant 2 : i32
    %338 = arith.muli %c4_i32_100, %c2_i32_101 : i32
    %339 = tpu.assume_multiple %338, 2 : i32
    %340 = arith.index_cast %339 : i32 to index
    %c0_102 = arith.constant 0 : index
    %341 = vector.load %arg11[%340, %c0_102] : memref<16x128xf32, #tpu.memory_space<vmem>>, vector<2x128xf32>
    %cst_103 = arith.constant dense<0.000000e+00> : vector<2x128xf32>
    %342 = tpu.matmul %329, %215, %cst_103 {dimension_numbers = #tpu.dot_dimension_numbers<[1], [0], [0], [1], [0, 0, 1, 1], [], []>} : vector<2x32xf32>, vector<32x128xf32>, vector<2x128xf32> -> vector<2x128xf32>
    %343 = arith.addf %341, %342 : vector<2x128xf32>
    %344 = arith.negf %343 : vector<2x128xf32>
    %345 = math.exp %344 : vector<2x128xf32>
    %cst_104 = arith.constant 1.000000e+00 : f32
    %346 = vector.broadcast %cst_104 : f32 to vector<2x128xf32>
    %347 = arith.addf %346, %345 : vector<2x128xf32>
    %348 = arith.divf %346, %347 : vector<2x128xf32>
    %349 = math.tanh %343 : vector<2x128xf32>
    %350 = arith.select %5, %349, %348 : vector<2x128xi1>, vector<2x128xf32>
    %351 = vector.extract_strided_slice %350 {offsets = [0, 0], sizes = [2, 32], strides = [1, 1]} : vector<2x128xf32> to vector<2x32xf32>
    %352 = vector.extract_strided_slice %350 {offsets = [0, 32], sizes = [2, 32], strides = [1, 1]} : vector<2x128xf32> to vector<2x32xf32>
    %353 = vector.extract_strided_slice %350 {offsets = [0, 64], sizes = [2, 32], strides = [1, 1]} : vector<2x128xf32> to vector<2x32xf32>
    %354 = vector.extract_strided_slice %350 {offsets = [0, 96], sizes = [2, 32], strides = [1, 1]} : vector<2x128xf32> to vector<2x32xf32>
    %355 = arith.mulf %352, %327 : vector<2x32xf32>
    %356 = arith.mulf %351, %353 : vector<2x32xf32>
    %357 = arith.addf %355, %356 : vector<2x32xf32>
    %358 = math.tanh %357 : vector<2x32xf32>
    %359 = arith.mulf %354, %358 : vector<2x32xf32>
    %360 = vector.extract_strided_slice %359 {offsets = [0, 0], sizes = [1, 32], strides = [1, 1]} : vector<2x32xf32> to vector<1x32xf32>
    %c0_i32_105 = arith.constant 0 : i32
    %361 = arith.addi %c0_i32_105, %c4_i32_100 : i32
    %362 = arith.index_cast %361 : i32 to index
    %c0_106 = arith.constant 0 : index
    %363 = vector.load %arg13[%362, %c0_106] : memref<16x32xf32, #tpu.memory_space<vmem>>, vector<1x32xf32>
    tpu.vector_store %arg13[%362, %c0_106], %360 {strides = array<i32>} : memref<16x32xf32, #tpu.memory_space<vmem>>, vector<1x32xf32>,
    %364 = vector.extract_strided_slice %359 {offsets = [1, 0], sizes = [1, 32], strides = [1, 1]} : vector<2x32xf32> to vector<1x32xf32>
    %c8_i32_107 = arith.constant 8 : i32
    %365 = arith.addi %c8_i32_107, %c4_i32_100 : i32
    %366 = arith.index_cast %365 : i32 to index
    %c0_108 = arith.constant 0 : index
    %367 = vector.load %arg13[%366, %c0_108] : memref<16x32xf32, #tpu.memory_space<vmem>>, vector<1x32xf32>
    tpu.vector_store %arg13[%366, %c0_108], %364 {strides = array<i32>} : memref<16x32xf32, #tpu.memory_space<vmem>>, vector<1x32xf32>,
    %c5_i32_109 = arith.constant 5 : i32
    %c2_i32_110 = arith.constant 2 : i32
    %368 = arith.muli %c5_i32_109, %c2_i32_110 : i32
    %369 = tpu.assume_multiple %368, 2 : i32
    %370 = arith.index_cast %369 : i32 to index
    %c0_111 = arith.constant 0 : index
    %371 = vector.load %arg11[%370, %c0_111] : memref<16x128xf32, #tpu.memory_space<vmem>>, vector<2x128xf32>
    %cst_112 = arith.constant dense<0.000000e+00> : vector<2x128xf32>
    %372 = tpu.matmul %359, %215, %cst_112 {dimension_numbers = #tpu.dot_dimension_numbers<[1], [0], [0], [1], [0, 0, 1, 1], [], []>} : vector<2x32xf32>, vector<32x128xf32>, vector<2x128xf32> -> vector<2x128xf32>
    %373 = arith.addf %371, %372 : vector<2x128xf32>
    %374 = arith.negf %373 : vector<2x128xf32>
    %375 = math.exp %374 : vector<2x128xf32>
    %cst_113 = arith.constant 1.000000e+00 : f32
    %376 = vector.broadcast %cst_113 : f32 to vector<2x128xf32>
    %377 = arith.addf %376, %375 : vector<2x128xf32>
    %378 = arith.divf %376, %377 : vector<2x128xf32>
    %379 = math.tanh %373 : vector<2x128xf32>
    %380 = arith.select %5, %379, %378 : vector<2x128xi1>, vector<2x128xf32>
    %381 = vector.extract_strided_slice %380 {offsets = [0, 0], sizes = [2, 32], strides = [1, 1]} : vector<2x128xf32> to vector<2x32xf32>
    %382 = vector.extract_strided_slice %380 {offsets = [0, 32], sizes = [2, 32], strides = [1, 1]} : vector<2x128xf32> to vector<2x32xf32>
    %383 = vector.extract_strided_slice %380 {offsets = [0, 64], sizes = [2, 32], strides = [1, 1]} : vector<2x128xf32> to vector<2x32xf32>
    %384 = vector.extract_strided_slice %380 {offsets = [0, 96], sizes = [2, 32], strides = [1, 1]} : vector<2x128xf32> to vector<2x32xf32>
    %385 = arith.mulf %382, %357 : vector<2x32xf32>
    %386 = arith.mulf %381, %383 : vector<2x32xf32>
    %387 = arith.addf %385, %386 : vector<2x32xf32>
    %388 = math.tanh %387 : vector<2x32xf32>
    %389 = arith.mulf %384, %388 : vector<2x32xf32>
    %390 = vector.extract_strided_slice %389 {offsets = [0, 0], sizes = [1, 32], strides = [1, 1]} : vector<2x32xf32> to vector<1x32xf32>
    %c0_i32_114 = arith.constant 0 : i32
    %391 = arith.addi %c0_i32_114, %c5_i32_109 : i32
    %392 = arith.index_cast %391 : i32 to index
    %c0_115 = arith.constant 0 : index
    %393 = vector.load %arg13[%392, %c0_115] : memref<16x32xf32, #tpu.memory_space<vmem>>, vector<1x32xf32>
    tpu.vector_store %arg13[%392, %c0_115], %390 {strides = array<i32>} : memref<16x32xf32, #tpu.memory_space<vmem>>, vector<1x32xf32>,
    %394 = vector.extract_strided_slice %389 {offsets = [1, 0], sizes = [1, 32], strides = [1, 1]} : vector<2x32xf32> to vector<1x32xf32>
    %c8_i32_116 = arith.constant 8 : i32
    %395 = arith.addi %c8_i32_116, %c5_i32_109 : i32
    %396 = arith.index_cast %395 : i32 to index
    %c0_117 = arith.constant 0 : index
    %397 = vector.load %arg13[%396, %c0_117] : memref<16x32xf32, #tpu.memory_space<vmem>>, vector<1x32xf32>
    tpu.vector_store %arg13[%396, %c0_117], %394 {strides = array<i32>} : memref<16x32xf32, #tpu.memory_space<vmem>>, vector<1x32xf32>,
    %c6_i32_118 = arith.constant 6 : i32
    %c2_i32_119 = arith.constant 2 : i32
    %398 = arith.muli %c6_i32_118, %c2_i32_119 : i32
    %399 = tpu.assume_multiple %398, 2 : i32
    %400 = arith.index_cast %399 : i32 to index
    %c0_120 = arith.constant 0 : index
    %401 = vector.load %arg11[%400, %c0_120] : memref<16x128xf32, #tpu.memory_space<vmem>>, vector<2x128xf32>
    %cst_121 = arith.constant dense<0.000000e+00> : vector<2x128xf32>
    %402 = tpu.matmul %389, %215, %cst_121 {dimension_numbers = #tpu.dot_dimension_numbers<[1], [0], [0], [1], [0, 0, 1, 1], [], []>} : vector<2x32xf32>, vector<32x128xf32>, vector<2x128xf32> -> vector<2x128xf32>
    %403 = arith.addf %401, %402 : vector<2x128xf32>
    %404 = arith.negf %403 : vector<2x128xf32>
    %405 = math.exp %404 : vector<2x128xf32>
    %cst_122 = arith.constant 1.000000e+00 : f32
    %406 = vector.broadcast %cst_122 : f32 to vector<2x128xf32>
    %407 = arith.addf %406, %405 : vector<2x128xf32>
    %408 = arith.divf %406, %407 : vector<2x128xf32>
    %409 = math.tanh %403 : vector<2x128xf32>
    %410 = arith.select %5, %409, %408 : vector<2x128xi1>, vector<2x128xf32>
    %411 = vector.extract_strided_slice %410 {offsets = [0, 0], sizes = [2, 32], strides = [1, 1]} : vector<2x128xf32> to vector<2x32xf32>
    %412 = vector.extract_strided_slice %410 {offsets = [0, 32], sizes = [2, 32], strides = [1, 1]} : vector<2x128xf32> to vector<2x32xf32>
    %413 = vector.extract_strided_slice %410 {offsets = [0, 64], sizes = [2, 32], strides = [1, 1]} : vector<2x128xf32> to vector<2x32xf32>
    %414 = vector.extract_strided_slice %410 {offsets = [0, 96], sizes = [2, 32], strides = [1, 1]} : vector<2x128xf32> to vector<2x32xf32>
    %415 = arith.mulf %412, %387 : vector<2x32xf32>
    %416 = arith.mulf %411, %413 : vector<2x32xf32>
    %417 = arith.addf %415, %416 : vector<2x32xf32>
    %418 = math.tanh %417 : vector<2x32xf32>
    %419 = arith.mulf %414, %418 : vector<2x32xf32>
    %420 = vector.extract_strided_slice %419 {offsets = [0, 0], sizes = [1, 32], strides = [1, 1]} : vector<2x32xf32> to vector<1x32xf32>
    %c0_i32_123 = arith.constant 0 : i32
    %421 = arith.addi %c0_i32_123, %c6_i32_118 : i32
    %422 = arith.index_cast %421 : i32 to index
    %c0_124 = arith.constant 0 : index
    %423 = vector.load %arg13[%422, %c0_124] : memref<16x32xf32, #tpu.memory_space<vmem>>, vector<1x32xf32>
    tpu.vector_store %arg13[%422, %c0_124], %420 {strides = array<i32>} : memref<16x32xf32, #tpu.memory_space<vmem>>, vector<1x32xf32>,
    %424 = vector.extract_strided_slice %419 {offsets = [1, 0], sizes = [1, 32], strides = [1, 1]} : vector<2x32xf32> to vector<1x32xf32>
    %c8_i32_125 = arith.constant 8 : i32
    %425 = arith.addi %c8_i32_125, %c6_i32_118 : i32
    %426 = arith.index_cast %425 : i32 to index
    %c0_126 = arith.constant 0 : index
    %427 = vector.load %arg13[%426, %c0_126] : memref<16x32xf32, #tpu.memory_space<vmem>>, vector<1x32xf32>
    tpu.vector_store %arg13[%426, %c0_126], %424 {strides = array<i32>} : memref<16x32xf32, #tpu.memory_space<vmem>>, vector<1x32xf32>,
    %c7_i32_127 = arith.constant 7 : i32
    %c2_i32_128 = arith.constant 2 : i32
    %428 = arith.muli %c7_i32_127, %c2_i32_128 : i32
    %429 = tpu.assume_multiple %428, 2 : i32
    %430 = arith.index_cast %429 : i32 to index
    %c0_129 = arith.constant 0 : index
    %431 = vector.load %arg11[%430, %c0_129] : memref<16x128xf32, #tpu.memory_space<vmem>>, vector<2x128xf32>
    %cst_130 = arith.constant dense<0.000000e+00> : vector<2x128xf32>
    %432 = tpu.matmul %419, %215, %cst_130 {dimension_numbers = #tpu.dot_dimension_numbers<[1], [0], [0], [1], [0, 0, 1, 1], [], []>} : vector<2x32xf32>, vector<32x128xf32>, vector<2x128xf32> -> vector<2x128xf32>
    %433 = arith.addf %431, %432 : vector<2x128xf32>
    %434 = arith.negf %433 : vector<2x128xf32>
    %435 = math.exp %434 : vector<2x128xf32>
    %cst_131 = arith.constant 1.000000e+00 : f32
    %436 = vector.broadcast %cst_131 : f32 to vector<2x128xf32>
    %437 = arith.addf %436, %435 : vector<2x128xf32>
    %438 = arith.divf %436, %437 : vector<2x128xf32>
    %439 = math.tanh %433 : vector<2x128xf32>
    %440 = arith.select %5, %439, %438 : vector<2x128xi1>, vector<2x128xf32>
    %441 = vector.extract_strided_slice %440 {offsets = [0, 0], sizes = [2, 32], strides = [1, 1]} : vector<2x128xf32> to vector<2x32xf32>
    %442 = vector.extract_strided_slice %440 {offsets = [0, 32], sizes = [2, 32], strides = [1, 1]} : vector<2x128xf32> to vector<2x32xf32>
    %443 = vector.extract_strided_slice %440 {offsets = [0, 64], sizes = [2, 32], strides = [1, 1]} : vector<2x128xf32> to vector<2x32xf32>
    %444 = vector.extract_strided_slice %440 {offsets = [0, 96], sizes = [2, 32], strides = [1, 1]} : vector<2x128xf32> to vector<2x32xf32>
    %445 = arith.mulf %442, %417 : vector<2x32xf32>
    %446 = arith.mulf %441, %443 : vector<2x32xf32>
    %447 = arith.addf %445, %446 : vector<2x32xf32>
    %448 = math.tanh %447 : vector<2x32xf32>
    %449 = arith.mulf %444, %448 : vector<2x32xf32>
    %450 = vector.extract_strided_slice %449 {offsets = [0, 0], sizes = [1, 32], strides = [1, 1]} : vector<2x32xf32> to vector<1x32xf32>
    %c0_i32_132 = arith.constant 0 : i32
    %451 = arith.addi %c0_i32_132, %c7_i32_127 : i32
    %452 = arith.index_cast %451 : i32 to index
    %c0_133 = arith.constant 0 : index
    %453 = vector.load %arg13[%452, %c0_133] : memref<16x32xf32, #tpu.memory_space<vmem>>, vector<1x32xf32>
    tpu.vector_store %arg13[%452, %c0_133], %450 {strides = array<i32>} : memref<16x32xf32, #tpu.memory_space<vmem>>, vector<1x32xf32>,
    %454 = vector.extract_strided_slice %449 {offsets = [1, 0], sizes = [1, 32], strides = [1, 1]} : vector<2x32xf32> to vector<1x32xf32>
    %c8_i32_134 = arith.constant 8 : i32
    %455 = arith.addi %c8_i32_134, %c7_i32_127 : i32
    %456 = arith.index_cast %455 : i32 to index
    %c0_135 = arith.constant 0 : index
    %457 = vector.load %arg13[%456, %c0_135] : memref<16x32xf32, #tpu.memory_space<vmem>>, vector<1x32xf32>
    tpu.vector_store %arg13[%456, %c0_135], %454 {strides = array<i32>} : memref<16x32xf32, #tpu.memory_space<vmem>>, vector<1x32xf32>,
    %c8_i32_136 = arith.constant 8 : i32
    %c0_137 = arith.constant 0 : index
    %c0_138 = arith.constant 0 : index
    %458 = vector.load %arg13[%c0_137, %c0_138] : memref<16x32xf32, #tpu.memory_space<vmem>>, vector<16x32xf32>
    %c0_139 = arith.constant 0 : index
    %c0_140 = arith.constant 0 : index
    %459 = vector.load %arg8[%c0_139, %c0_140] : memref<32x16xf32, #tpu.memory_space<vmem>>, vector<32x16xf32>
    %cst_141 = arith.constant dense<0.000000e+00> : vector<16x16xf32>
    %460 = tpu.matmul %458, %459, %cst_141 {dimension_numbers = #tpu.dot_dimension_numbers<[1], [0], [0], [1], [0, 0, 1, 1], [], []>} : vector<16x32xf32>, vector<32x16xf32>, vector<16x16xf32> -> vector<16x16xf32>
    %c0_142 = arith.constant 0 : index
    %c0_143 = arith.constant 0 : index
    %461 = vector.load %arg9[%c0_142, %c0_143] : memref<1x16xf32, #tpu.memory_space<vmem>>, vector<1x16xf32>
    %462 = vector.broadcast %461 : vector<1x16xf32> to vector<16x16xf32>
    %463 = arith.addf %460, %462 : vector<16x16xf32>
    %c0_144 = arith.constant 0 : index
    %c0_145 = arith.constant 0 : index
    %464 = vector.load %arg10[%c0_144, %c0_145] : memref<16x16xf32, #tpu.memory_space<vmem>>, vector<16x16xf32>
    tpu.vector_store %arg10[%c0_144, %c0_145], %463 {strides = array<i32>} : memref<16x16xf32, #tpu.memory_space<vmem>>, vector<16x16xf32>,
    return
  }
  func.func @transform_0(%arg0: i32) -> (i32, i32) {
    %c0_i32 = arith.constant 0 : i32
    %c0_i32_0 = arith.constant 0 : i32
    %c0_i32_1 = arith.constant 0 : i32
    return %c0_i32, %c0_i32_0 : i32, i32
  }
  func.func @transform_1(%arg0: i32) -> (i32, i32) {
    %c0_i32 = arith.constant 0 : i32
    %c0_i32_0 = arith.constant 0 : i32
    %c0_i32_1 = arith.constant 0 : i32
    return %c0_i32, %c0_i32_0 : i32, i32
  }
  func.func @transform_2(%arg0: i32) -> (i32, i32) {
    %c0_i32 = arith.constant 0 : i32
    %c0_i32_0 = arith.constant 0 : i32
    %c0_i32_1 = arith.constant 0 : i32
    return %c0_i32, %c0_i32_0 : i32, i32
  }
  func.func @transform_3(%arg0: i32) -> (i32, i32) {
    %c0_i32 = arith.constant 0 : i32
    %c0_i32_0 = arith.constant 0 : i32
    %c0_i32_1 = arith.constant 0 : i32
    return %c0_i32, %c0_i32_0 : i32, i32
  }
  func.func @transform_4(%arg0: i32) -> (i32, i32) {
    %c0_i32 = arith.constant 0 : i32
    %c0_i32_0 = arith.constant 0 : i32
    %c0_i32_1 = arith.constant 0 : i32
    return %c0_i32, %c0_i32_0 : i32, i32
  }
  func.func @transform_5(%arg0: i32) -> (i32, i32) {
    %c0_i32 = arith.constant 0 : i32
    %c0_i32_0 = arith.constant 0 : i32
    %c0_i32_1 = arith.constant 0 : i32
    return %c0_i32, %c0_i32_0 : i32, i32
  }
  func.func @transform_6(%arg0: i32) -> (i32, i32) {
    %c0_i32 = arith.constant 0 : i32
    %c0_i32_0 = arith.constant 0 : i32
    %c0_i32_1 = arith.constant 0 : i32
    return %c0_i32, %c0_i32_0 : i32, i32
  }
  func.func @transform_7(%arg0: i32) -> (i32, i32) {
    %c0_i32 = arith.constant 0 : i32
    %c0_i32_0 = arith.constant 0 : i32
    %c0_i32_1 = arith.constant 0 : i32
    return %c0_i32, %c0_i32_0 : i32, i32
  }
  func.func @transform_8(%arg0: i32) -> (i32, i32) {
    %c0_i32 = arith.constant 0 : i32
    %c0_i32_0 = arith.constant 0 : i32
    %c0_i32_1 = arith.constant 0 : i32
    return %c0_i32, %c0_i32_0 : i32, i32
  }
  func.func @transform_9(%arg0: i32) -> (i32, i32) {
    %c0_i32 = arith.constant 0 : i32
    %c0_i32_0 = arith.constant 0 : i32
    %c0_i32_1 = arith.constant 0 : i32
    return %c0_i32, %c0_i32_0 : i32, i32
  }
}

</mosaic_0001>

<llo_original>
// kernel: question_generator_forward.1
$region0: #{question_generator_forward.1}
  #allocation0 [shape = 'u32[]', space=smem, size = 0x4, offset = 0x4, fixed_abs, tag = 'smem constant byte address 0x4 - core index']
  #allocation1 [shape = 'u32[144,128]{1,0:T(1,128)}', space=vmem, size = 0x12000, scoped, tag = 'internal scratch']
  #allocation2 [shape = 'f32[16,128]{1,0:T(8,128)}', space=vmem, size = 0x2000, scoped, tag = 'scratch operand']
  #allocation3 [shape = 'f32[16,32]{1,0:T(8,128)}', space=vmem, size = 0x2000, scoped, tag = 'scratch operand']
  #allocation4 [shape = 'f32[16,32]{1,0:T(8,128)}', space=vmem, size = 0x2000, scoped, tag = 'scratch operand']
  %s0 = inlined_call_operand.vmem [shape: f32[16,32], index: 0, kind: input, shape index: {}]
  %s1 = inlined_call_operand.vmem [shape: f32[32,128], index: 1, kind: input, shape index: {}]
  %s2 = inlined_call_operand.vmem [shape: f32[32,128], index: 2, kind: input, shape index: {}]
  %s3 = inlined_call_operand.vmem [shape: f32[1,128], index: 3, kind: input, shape index: {}]
  %s4 = inlined_call_operand.vmem [shape: f32[32,128], index: 4, kind: input, shape index: {}]
  %s5 = inlined_call_operand.vmem [shape: f32[32,128], index: 5, kind: input, shape index: {}]
  %s6 = inlined_call_operand.vmem [shape: f32[1,128], index: 6, kind: input, shape index: {}]
  %s7 = inlined_call_operand.vmem [shape: f32[32,16], index: 7, kind: input, shape index: {}]
  %s8 = inlined_call_operand.vmem [shape: f32[1,16], index: 8, kind: input, shape index: {}]
  %s9 = inlined_call_operand.hbm [shape: f32[16,16], index: 9, kind: output, shape index: {}]
  %s10 = sld [smem:[#allocation0]]
  $region46: #{question_generator_forward.1} parent=0
    _
  %s12 = ssub.s32 1, %s10
  %s13 = scalar_select 0, %s12, %s10
  $region1: #{question_generator_forward.1} parent=0
    #allocation5 [shape = 'u8[8192]{0}', space=vmem, size = 0x2000, scoped, tag = 'output window, operand 0, single buffered']
    #allocation6 [shape = 's32[1]{0}', space=sflag, size = 0x4, scoped, tag = 'scoped memory for question_generator_forward.1']
    %14 = vsyncpa [#allocation6], 0
    // Predicated region
    $region2: #{question_generator_forward.1} parent=1 // pred_check
      _
    $region3: #{question_generator_forward.1} parent=1 // pred_check_branch
      %16 = sbr.rel (0) target = $region5
    $region4: #{question_generator_forward.1} parent=1 // pred_region
      _
    $region5: #{question_generator_forward.1} parent=1 // pred_fallthru
      _
    // Predicated region
    $region6: #{question_generator_forward.1} parent=1 // pred_check
      _
    $region7: #{question_generator_forward.1} parent=1 // pred_check_branch
      %18 = sbr.rel (0) target = $region9
    $region8: #{question_generator_forward.1} parent=1 // pred_region
      _
    $region9: #{question_generator_forward.1} parent=1 // pred_fallthru
      _
    // Predicated region
    $region10: #{question_generator_forward.1} parent=1 // pred_check
      _
    $region11: #{question_generator_forward.1} parent=1 // pred_check_branch
      %20 = sbr.rel (0) target = $region13
    $region12: #{question_generator_forward.1} parent=1 // pred_region
      _
    $region13: #{question_generator_forward.1} parent=1 // pred_fallthru
      _
    // Predicated region
    $region14: #{question_generator_forward.1} parent=1 // pred_check
      _
    $region15: #{question_generator_forward.1} parent=1 // pred_check_branch
      %22 = sbr.rel (0) target = $region17
    $region16: #{question_generator_forward.1} parent=1 // pred_region
      _
    $region17: #{question_generator_forward.1} parent=1 // pred_fallthru
      _
    // Predicated region
    $region18: #{question_generator_forward.1} parent=1 // pred_check
      _
    $region19: #{question_generator_forward.1} parent=1 // pred_check_branch
      %24 = sbr.rel (0) target = $region21
    $region20: #{question_generator_forward.1} parent=1 // pred_region
      _
    $region21: #{question_generator_forward.1} parent=1 // pred_fallthru
      _
    // Predicated region
    $region22: #{question_generator_forward.1} parent=1 // pred_check
      _
    $region23: #{question_generator_forward.1} parent=1 // pred_check_branch
      %26 = sbr.rel (0) target = $region25
    $region24: #{question_generator_forward.1} parent=1 // pred_region
      _
    $region25: #{question_generator_forward.1} parent=1 // pred_fallthru
      _
    // Predicated region
    $region26: #{question_generator_forward.1} parent=1 // pred_check
      _
    $region27: #{question_generator_forward.1} parent=1 // pred_check_branch
      %28 = sbr.rel (0) target = $region29
    $region28: #{question_generator_forward.1} parent=1 // pred_region
      _
    $region29: #{question_generator_forward.1} parent=1 // pred_fallthru
      _
    // Predicated region
    $region30: #{question_generator_forward.1} parent=1 // pred_check
      _
    $region31: #{question_generator_forward.1} parent=1 // pred_check_branch
      %30 = sbr.rel (0) target = $region33
    $region32: #{question_generator_forward.1} parent=1 // pred_region
      _
    $region33: #{question_generator_forward.1} parent=1 // pred_fallthru
      _
    // Predicated region
    $region34: #{question_generator_forward.1} parent=1 // pred_check
      _
    $region35: #{question_generator_forward.1} parent=1 // pred_check_branch
      %32 = sbr.rel (0) target = $region37
    $region36: #{question_generator_forward.1} parent=1 // pred_region
      _
    $region37: #{question_generator_forward.1} parent=1 // pred_fallthru
      _
    %v33 = vlaneseq
    %v34 = vand.u32 %v33, 127
    %vm35 = vcmp.ge.s32.totalorder %v34, 64
    %vm36 = vcmp.lt.s32.totalorder %v34, 96
    %vm37 = vmand %vm35, %vm36
    %v38 = vld [vmem:[%s0] sm:$0xff]
    %v39 = vld [vmem:[%s0 + $0x8] sm:$0xff]
    %v40 = vld [vmem:[%s1] sm:$0xff]
    %v41 = vld [vmem:[%s1 + $0x8] sm:$0xff]
    %v42 = vld [vmem:[%s1 + $0x10] sm:$0xff]
    %v43 = vld [vmem:[%s1 + $0x18] sm:$0xff]
    %v44 = vld [vmem:[%s3] sm:$0x1]
    %v46 = vlaneseq
    %v47 = vshrl.u32 %v46, 7
    %v48 = vsub.s32 0, %v47
    %v49 = vrot.slane %v44, %v48
    %vm51 = vcmask 261120
    %v53 = vsel %vm51, %v38, 0
    %v56 = vsel %vm51, %v39, 0
    %58 = vmatprep.subr.mxu0 0.0
    %59 = vmatpush1.msra.mxu0 0.0
    %60 = vmatprep.subr.mxu0 0.0
    %61 = vmatpush1.msra.mxu0 0.0
    %62 = vmatprep.subr.mxu0 0.0
    %63 = vmatpush1.msra.mxu0 0.0
    %64 = vmatprep.subr.mxu0 0.0
    %65 = vmatpush1.msra.mxu0 0.0
    %66 = vmatprep.subr.mxu0 0.0
    %67 = vmatpush1.msra.mxu0 0.0
    %68 = vmatprep.subr.mxu0 0.0
    %69 = vmatpush1.msra.mxu0 0.0
    %70 = vmatprep.subr.mxu0 0.0
    %71 = vmatpush1.msra.mxu0 0.0
    %72 = vmatprep.subr.mxu0 0.0
    %73 = vmatpush1.msra.mxu0 0.0
    %74 = vmatprep.subr.mxu0 0.0
    %75 = vmatpush1.msra.mxu0 0.0
    %76 = vmatprep.subr.mxu0 0.0
    %77 = vmatpush1.msra.mxu0 0.0
    %78 = vmatprep.subr.mxu0 0.0
    %79 = vmatpush1.msra.mxu0 0.0
    %80 = vmatprep.subr.mxu0 0.0
    %81 = vmatpush1.msra.mxu0 0.0
    %82 = vmatprep.subr.mxu0 0.0
    %83 = vmatpush1.msra.mxu0 %v43
    %84 = vmatprep.subr.mxu0 0.0
    %85 = vmatpush1.msra.mxu0 %v42
    %86 = vmatprep.subr.mxu0 0.0
    %87 = vmatpush1.msra.mxu0 %v41
    %88 = vmatprep.subr.mxu0 0.0
    %89 = vmatpush1.msra.mxu0 %v40
    %90 = vmatprep.subr.mxu0 0.0
    %91 = vmatpush2.msra.mxu0 0.0
    %92 = vmatprep.subr.mxu0 0.0
    %93 = vmatpush2.msra.mxu0 0.0
    %94 = vmatprep.subr.mxu0 0.0
    %95 = vmatpush2.msra.mxu0 0.0
    %96 = vmatprep.subr.mxu0 0.0
    %97 = vmatpush2.msra.mxu0 0.0
    %98 = vmatprep.subr.mxu0 0.0
    %99 = vmatpush2.msra.mxu0 0.0
    %100 = vmatprep.subr.mxu0 0.0
    %101 = vmatpush2.msra.mxu0 0.0
    %102 = vmatprep.subr.mxu0 0.0
    %103 = vmatpush2.msra.mxu0 0.0
    %104 = vmatprep.subr.mxu0 0.0
    %105 = vmatpush2.msra.mxu0 0.0
    %106 = vmatprep.subr.mxu0 0.0
    %107 = vmatpush2.msra.mxu0 0.0
    %108 = vmatprep.subr.mxu0 0.0
    %109 = vmatpush2.msra.mxu0 0.0
    %110 = vmatprep.subr.mxu0 0.0
    %111 = vmatpush2.msra.mxu0 0.0
    %112 = vmatprep.subr.mxu0 0.0
    %113 = vmatpush2.msra.mxu0 0.0
    %114 = vmatprep.subr.mxu0 0.0
    %115 = vmatpush2.msra.mxu0 0.0
    %116 = vmatprep.subr.mxu0 0.0
    %117 = vmatpush2.msra.mxu0 0.0
    %118 = vmatprep.subr.mxu0 0.0
    %119 = vmatpush2.msra.mxu0 0.0
    %120 = vmatprep.subr.mxu0 0.0
    %121 = vmatpush2.msra.mxu0 0.0
    %122 = vmatprep.mubr.f32.mxu0 0.0
    %123 = vmatmul.mubr.f32.gmra.mxu0 %v53
    %v124 = vpop.f32.mrf.mxu0
    %v125 = vadd.f32 %v49, %v124
    %v126 = vpop.f32.mrf.mxu0
    %127 = vmatprep.mubr.f32.mxu0 0.0
    %128 = vmatmul.mubr.f32.gmra.mxu0 %v56
    %v129 = vpop.f32.mrf.mxu0
    %v130 = vadd.f32 %v49, %v129
    %v131 = vpop.f32.mrf.mxu0
    %132 = vdwg.mxu0
    %133 = vst [vmem:[#allocation2] sm:$0xff] %v125
    %134 = vst [vmem:[#allocation2 + $0x8] sm:$0xff] %v130
    %v135 = vld [vmem:[%s2] sm:$0xff]
    %v136 = vld [vmem:[%s2 + $0x8] sm:$0xff]
    %v137 = vld [vmem:[%s2 + $0x10] sm:$0xff]
    %v138 = vld [vmem:[%s2 + $0x18] sm:$0xff]
    %v139 = vld [vmem:[#allocation2] sm:$0x3]
    %v141 = vsel %vm51, 0.0, 0
    %143 = vmatprep.subr.mxu0 0.0
    %144 = vmatpush1.msra.mxu0 0.0
    %145 = vmatprep.subr.mxu0 0.0
    %146 = vmatpush1.msra.mxu0 0.0
    %147 = vmatprep.subr.mxu0 0.0
    %148 = vmatpush1.msra.mxu0 0.0
    %149 = vmatprep.subr.mxu0 0.0
    %150 = vmatpush1.msra.mxu0 0.0
    %151 = vmatprep.subr.mxu0 0.0
    %152 = vmatpush1.msra.mxu0 0.0
    %153 = vmatprep.subr.mxu0 0.0
    %154 = vmatpush1.msra.mxu0 0.0
    %155 = vmatprep.subr.mxu0 0.0
    %156 = vmatpush1.msra.mxu0 0.0
    %157 = vmatprep.subr.mxu0 0.0
    %158 = vmatpush1.msra.mxu0 0.0
    %159 = vmatprep.subr.mxu0 0.0
    %160 = vmatpush1.msra.mxu0 0.0
    %161 = vmatprep.subr.mxu0 0.0
    %162 = vmatpush1.msra.mxu0 0.0
    %163 = vmatprep.subr.mxu0 0.0
    %164 = vmatpush1.msra.mxu0 0.0
    %165 = vmatprep.subr.mxu0 0.0
    %166 = vmatpush1.msra.mxu0 0.0
    %167 = vmatprep.subr.mxu0 0.0
    %168 = vmatpush1.msra.mxu0 %v138
    %169 = vmatprep.subr.mxu0 0.0
    %170 = vmatpush1.msra.mxu0 %v137
    %171 = vmatprep.subr.mxu0 0.0
    %172 = vmatpush1.msra.mxu0 %v136
    %173 = vmatprep.subr.mxu0 0.0
    %174 = vmatpush1.msra.mxu0 %v135
    %175 = vmatprep.subr.mxu0 0.0
    %176 = vmatpush2.msra.mxu0 0.0
    %177 = vmatprep.subr.mxu0 0.0
    %178 = vmatpush2.msra.mxu0 0.0
    %179 = vmatprep.subr.mxu0 0.0
    %180 = vmatpush2.msra.mxu0 0.0
    %181 = vmatprep.subr.mxu0 0.0
    %182 = vmatpush2.msra.mxu0 0.0
    %183 = vmatprep.subr.mxu0 0.0
    %184 = vmatpush2.msra.mxu0 0.0
    %185 = vmatprep.subr.mxu0 0.0
    %186 = vmatpush2.msra.mxu0 0.0
    %187 = vmatprep.subr.mxu0 0.0
    %188 = vmatpush2.msra.mxu0 0.0
    %189 = vmatprep.subr.mxu0 0.0
    %190 = vmatpush2.msra.mxu0 0.0
    %191 = vmatprep.subr.mxu0 0.0
    %192 = vmatpush2.msra.mxu0 0.0
    %193 = vmatprep.subr.mxu0 0.0
    %194 = vmatpush2.msra.mxu0 0.0
    %195 = vmatprep.subr.mxu0 0.0
    %196 = vmatpush2.msra.mxu0 0.0
    %197 = vmatprep.subr.mxu0 0.0
    %198 = vmatpush2.msra.mxu0 0.0
    %199 = vmatprep.subr.mxu0 0.0
    %200 = vmatpush2.msra.mxu0 0.0
    %201 = vmatprep.subr.mxu0 0.0
    %202 = vmatpush2.msra.mxu0 0.0
    %203 = vmatprep.subr.mxu0 0.0
    %204 = vmatpush2.msra.mxu0 0.0
    %205 = vmatprep.subr.mxu0 0.0
    %206 = vmatpush2.msra.mxu0 0.0
    %207 = vmatprep.mubr.f32.mxu0 0.0
    %208 = vmatmul.mubr.f32.gmra.mxu0 %v141
    %v209 = vpop.f32.mrf.mxu0
    %v210 = vadd.f32 0.0, %v209
    %v211 = vpop.f32.mrf.mxu0
    %212 = vdwg.mxu0
    %v213 = vadd.f32 %v139, %v210
    %v214 = vxor.u32 %v213, 2147483648
    %v215 = vmul.f32 %v214, 1.442695
    %v216 = vpow.pop %v215
    %v217 = vadd.f32 %v216, 1.0
    %v218 = vrcp.pop %v217
    %v219 = vmul.f32 1.0, %v218
    %v220 = vtanh.pop %v213
    %v221 = vsel %vm37, %v220, %v219
    %v222 = vmul.f32 %v221, 0.0
    %224 = vrot.lane.b32.xlu0 %v221, 64
    %v225 = vpop.permute.xlu0 %224
    %v227 = vmul.f32 %v221, %v225
    %229 = vrot.lane.b32.xlu0 %v227, 32
    %v230 = vpop.permute.xlu0 %229
    %v232 = vadd.f32 %v222, %v230
    %v233 = vtanh.pop %v232
    %235 = vrot.lane.b32.xlu0 %v233, 64
    %v236 = vpop.permute.xlu0 %235
    %v238 = vmul.f32 %v221, %v236
    %240 = vrot.lane.b32.xlu0 %v238, 32
    %v241 = vpop.permute.xlu0 %240
    %vm243 = vcmask 254976
    %244 = vst.msk [vmem:[#allocation3] sm:$0x3] %vm243, %v241
    %s245 = scalar_lea.vmem [#allocation2], 2
    %v246 = vld [vmem:[%s245] sm:$0x3]
    %v247 = vsel %vm51, %v241, 0
    %249 = vmatprep.subr.mxu0 0.0
    %250 = vmatpush1.msra.mxu0 0.0
    %251 = vmatprep.subr.mxu0 0.0
    %252 = vmatpush1.msra.mxu0 0.0
    %253 = vmatprep.subr.mxu0 0.0
    %254 = vmatpush1.msra.mxu0 0.0
    %255 = vmatprep.subr.mxu0 0.0
    %256 = vmatpush1.msra.mxu0 0.0
    %257 = vmatprep.subr.mxu0 0.0
    %258 = vmatpush1.msra.mxu0 0.0
    %259 = vmatprep.subr.mxu0 0.0
    %260 = vmatpush1.msra.mxu0 0.0
    %261 = vmatprep.subr.mxu0 0.0
    %262 = vmatpush1.msra.mxu0 0.0
    %263 = vmatprep.subr.mxu0 0.0
    %264 = vmatpush1.msra.mxu0 0.0
    %265 = vmatprep.subr.mxu0 0.0
    %266 = vmatpush1.msra.mxu0 0.0
    %267 = vmatprep.subr.mxu0 0.0
    %268 = vmatpush1.msra.mxu0 0.0
    %269 = vmatprep.subr.mxu0 0.0
    %270 = vmatpush1.msra.mxu0 0.0
    %271 = vmatprep.subr.mxu0 0.0
    %272 = vmatpush1.msra.mxu0 0.0
    %273 = vmatprep.subr.mxu0 0.0
    %274 = vmatpush1.msra.mxu0 %v138
    %275 = vmatprep.subr.mxu0 0.0
    %276 = vmatpush1.msra.mxu0 %v137
    %277 = vmatprep.subr.mxu0 0.0
    %278 = vmatpush1.msra.mxu0 %v136
    %279 = vmatprep.subr.mxu0 0.0
    %280 = vmatpush1.msra.mxu0 %v135
    %281 = vmatprep.subr.mxu0 0.0
    %282 = vmatpush2.msra.mxu0 0.0
    %283 = vmatprep.subr.mxu0 0.0
    %284 = vmatpush2.msra.mxu0 0.0
    %285 = vmatprep.subr.mxu0 0.0
    %286 = vmatpush2.msra.mxu0 0.0
    %287 = vmatprep.subr.mxu0 0.0
    %288 = vmatpush2.msra.mxu0 0.0
    %289 = vmatprep.subr.mxu0 0.0
    %290 = vmatpush2.msra.mxu0 0.0
    %291 = vmatprep.subr.mxu0 0.0
    %292 = vmatpush2.msra.mxu0 0.0
    %293 = vmatprep.subr.mxu0 0.0
    %294 = vmatpush2.msra.mxu0 0.0
    %295 = vmatprep.subr.mxu0 0.0
    %296 = vmatpush2.msra.mxu0 0.0
    %297 = vmatprep.subr.mxu0 0.0
    %298 = vmatpush2.msra.mxu0 0.0
    %299 = vmatprep.subr.mxu0 0.0
    %300 = vmatpush2.msra.mxu0 0.0
    %301 = vmatprep.subr.mxu0 0.0
    %302 = vmatpush2.msra.mxu0 0.0
    %303 = vmatprep.subr.mxu0 0.0
    %304 = vmatpush2.msra.mxu0 0.0
    %305 = vmatprep.subr.mxu0 0.0
    %306 = vmatpush2.msra.mxu0 0.0
    %307 = vmatprep.subr.mxu0 0.0
    %308 = vmatpush2.msra.mxu0 0.0
    %309 = vmatprep.subr.mxu0 0.0
    %310 = vmatpush2.msra.mxu0 0.0
    %311 = vmatprep.subr.mxu0 0.0
    %312 = vmatpush2.msra.mxu0 0.0
    %313 = vmatprep.mubr.f32.mxu0 0.0
    %314 = vmatmul.mubr.f32.gmra.mxu0 %v247
    %v315 = vpop.f32.mrf.mxu0
    %v316 = vadd.f32 0.0, %v315
    %v317 = vpop.f32.mrf.mxu0
    %318 = vdwg.mxu0
    %v319 = vadd.f32 %v246, %v316
    %v320 = vxor.u32 %v319, 2147483648
    %v321 = vmul.f32 %v320, 1.442695
    %v322 = vpow.pop %v321
    %v323 = vadd.f32 %v322, 1.0
    %v324 = vrcp.pop %v323
    %v325 = vmul.f32 1.0, %v324
    %v326 = vtanh.pop %v319
    %v327 = vsel %vm37, %v326, %v325
    %v328 = vmul.f32 %v327, %v232
    %330 = vrot.lane.b32.xlu0 %v327, 64
    %v331 = vpop.permute.xlu0 %330
    %v333 = vmul.f32 %v327, %v331
    %335 = vrot.lane.b32.xlu0 %v333, 32
    %v336 = vpop.permute.xlu0 %335
    %v338 = vadd.f32 %v328, %v336
    %v339 = vtanh.pop %v338
    %341 = vrot.lane.b32.xlu0 %v339, 64
    %v342 = vpop.permute.xlu0 %341
    %v344 = vmul.f32 %v327, %v342
    %346 = vrot.lane.b32.xlu0 %v344, 32
    %v347 = vpop.permute.xlu0 %346
    %s349 = scalar_lea.vmem [#allocation3], 2
    %350 = vst.msk [vmem:[%s349] sm:$0x3] %vm243, %v347
    %s351 = scalar_lea.vmem [#allocation2], 4
    %v352 = vld [vmem:[%s351] sm:$0x3]
    %v353 = vsel %vm51, %v347, 0
    %355 = vmatprep.subr.mxu0 0.0
    %356 = vmatpush1.msra.mxu0 0.0
    %357 = vmatprep.subr.mxu0 0.0
    %358 = vmatpush1.msra.mxu0 0.0
    %359 = vmatprep.subr.mxu0 0.0
    %360 = vmatpush1.msra.mxu0 0.0
    %361 = vmatprep.subr.mxu0 0.0
    %362 = vmatpush1.msra.mxu0 0.0
    %363 = vmatprep.subr.mxu0 0.0
    %364 = vmatpush1.msra.mxu0 0.0
    %365 = vmatprep.subr.mxu0 0.0
    %366 = vmatpush1.msra.mxu0 0.0
    %367 = vmatprep.subr.mxu0 0.0
    %368 = vmatpush1.msra.mxu0 0.0
    %369 = vmatprep.subr.mxu0 0.0
    %370 = vmatpush1.msra.mxu0 0.0
    %371 = vmatprep.subr.mxu0 0.0
    %372 = vmatpush1.msra.mxu0 0.0
    %373 = vmatprep.subr.mxu0 0.0
    %374 = vmatpush1.msra.mxu0 0.0
    %375 = vmatprep.subr.mxu0 0.0
    %376 = vmatpush1.msra.mxu0 0.0
    %377 = vmatprep.subr.mxu0 0.0
    %378 = vmatpush1.msra.mxu0 0.0
    %379 = vmatprep.subr.mxu0 0.0
    %380 = vmatpush1.msra.mxu0 %v138
    %381 = vmatprep.subr.mxu0 0.0
    %382 = vmatpush1.msra.mxu0 %v137
    %383 = vmatprep.subr.mxu0 0.0
    %384 = vmatpush1.msra.mxu0 %v136
    %385 = vmatprep.subr.mxu0 0.0
    %386 = vmatpush1.msra.mxu0 %v135
    %387 = vmatprep.subr.mxu0 0.0
    %388 = vmatpush2.msra.mxu0 0.0
    %389 = vmatprep.subr.mxu0 0.0
    %390 = vmatpush2.msra.mxu0 0.0
    %391 = vmatprep.subr.mxu0 0.0
    %392 = vmatpush2.msra.mxu0 0.0
    %393 = vmatprep.subr.mxu0 0.0
    %394 = vmatpush2.msra.mxu0 0.0
    %395 = vmatprep.subr.mxu0 0.0
    %396 = vmatpush2.msra.mxu0 0.0
    %397 = vmatprep.subr.mxu0 0.0
    %398 = vmatpush2.msra.mxu0 0.0
    %399 = vmatprep.subr.mxu0 0.0
    %400 = vmatpush2.msra.mxu0 0.0
    %401 = vmatprep.subr.mxu0 0.0
    %402 = vmatpush2.msra.mxu0 0.0
    %403 = vmatprep.subr.mxu0 0.0
    %404 = vmatpush2.msra.mxu0 0.0
    %405 = vmatprep.subr.mxu0 0.0
    %406 = vmatpush2.msra.mxu0 0.0
    %407 = vmatprep.subr.mxu0 0.0
    %408 = vmatpush2.msra.mxu0 0.0
    %409 = vmatprep.subr.mxu0 0.0
    %410 = vmatpush2.msra.mxu0 0.0
    %411 = vmatprep.subr.mxu0 0.0
    %412 = vmatpush2.msra.mxu0 0.0
    %413 = vmatprep.subr.mxu0 0.0
    %414 = vmatpush2.msra.mxu0 0.0
    %415 = vmatprep.subr.mxu0 0.0
    %416 = vmatpush2.msra.mxu0 0.0
    %417 = vmatprep.subr.mxu0 0.0
    %418 = vmatpush2.msra.mxu0 0.0
    %419 = vmatprep.mubr.f32.mxu0 0.0
    %420 = vmatmul.mubr.f32.gmra.mxu0 %v353
    %v421 = vpop.f32.mrf.mxu0
    %v422 = vadd.f32 0.0, %v421
    %v423 = vpop.f32.mrf.mxu0
    %424 = vdwg.mxu0
    %v425 = vadd.f32 %v352, %v422
    %v426 = vxor.u32 %v425, 2147483648
    %v427 = vmul.f32 %v426, 1.442695
    %v428 = vpow.pop %v427
    %v429 = vadd.f32 %v428, 1.0
    %v430 = vrcp.pop %v429
    %v431 = vmul.f32 1.0, %v430
    %v432 = vtanh.pop %v425
    %v433 = vsel %vm37, %v432, %v431
    %v434 = vmul.f32 %v433, %v338
    %436 = vrot.lane.b32.xlu0 %v433, 64
    %v437 = vpop.permute.xlu0 %436
    %v439 = vmul.f32 %v433, %v437
    %441 = vrot.lane.b32.xlu0 %v439, 32
    %v442 = vpop.permute.xlu0 %441
    %v444 = vadd.f32 %v434, %v442
    %v445 = vtanh.pop %v444
    %447 = vrot.lane.b32.xlu0 %v445, 64
    %v448 = vpop.permute.xlu0 %447
    %v450 = vmul.f32 %v433, %v448
    %452 = vrot.lane.b32.xlu0 %v450, 32
    %v453 = vpop.permute.xlu0 %452
    %s455 = scalar_lea.vmem [#allocation3], 4
    %456 = vst.msk [vmem:[%s455] sm:$0x3] %vm243, %v453
    %s457 = scalar_lea.vmem [#allocation2], 6
    %v458 = vld [vmem:[%s457] sm:$0x3]
    %v459 = vsel %vm51, %v453, 0
    %461 = vmatprep.subr.mxu0 0.0
    %462 = vmatpush1.msra.mxu0 0.0
    %463 = vmatprep.subr.mxu0 0.0
    %464 = vmatpush1.msra.mxu0 0.0
    %465 = vmatprep.subr.mxu0 0.0
    %466 = vmatpush1.msra.mxu0 0.0
    %467 = vmatprep.subr.mxu0 0.0
    %468 = vmatpush1.msra.mxu0 0.0
    %469 = vmatprep.subr.mxu0 0.0
    %470 = vmatpush1.msra.mxu0 0.0
    %471 = vmatprep.subr.mxu0 0.0
    %472 = vmatpush1.msra.mxu0 0.0
    %473 = vmatprep.subr.mxu0 0.0
    %474 = vmatpush1.msra.mxu0 0.0
    %475 = vmatprep.subr.mxu0 0.0
    %476 = vmatpush1.msra.mxu0 0.0
    %477 = vmatprep.subr.mxu0 0.0
    %478 = vmatpush1.msra.mxu0 0.0
    %479 = vmatprep.subr.mxu0 0.0
    %480 = vmatpush1.msra.mxu0 0.0
    %481 = vmatprep.subr.mxu0 0.0
    %482 = vmatpush1.msra.mxu0 0.0
    %483 = vmatprep.subr.mxu0 0.0
    %484 = vmatpush1.msra.mxu0 0.0
    %485 = vmatprep.subr.mxu0 0.0
    %486 = vmatpush1.msra.mxu0 %v138
    %487 = vmatprep.subr.mxu0 0.0
    %488 = vmatpush1.msra.mxu0 %v137
    %489 = vmatprep.subr.mxu0 0.0
    %490 = vmatpush1.msra.mxu0 %v136
    %491 = vmatprep.subr.mxu0 0.0
    %492 = vmatpush1.msra.mxu0 %v135
    %493 = vmatprep.subr.mxu0 0.0
    %494 = vmatpush2.msra.mxu0 0.0
    %495 = vmatprep.subr.mxu0 0.0
    %496 = vmatpush2.msra.mxu0 0.0
    %497 = vmatprep.subr.mxu0 0.0
    %498 = vmatpush2.msra.mxu0 0.0
    %499 = vmatprep.subr.mxu0 0.0
    %500 = vmatpush2.msra.mxu0 0.0
    %501 = vmatprep.subr.mxu0 0.0
    %502 = vmatpush2.msra.mxu0 0.0
    %503 = vmatprep.subr.mxu0 0.0
    %504 = vmatpush2.msra.mxu0 0.0
    %505 = vmatprep.subr.mxu0 0.0
    %506 = vmatpush2.msra.mxu0 0.0
    %507 = vmatprep.subr.mxu0 0.0
    %508 = vmatpush2.msra.mxu0 0.0
    %509 = vmatprep.subr.mxu0 0.0
    %510 = vmatpush2.msra.mxu0 0.0
    %511 = vmatprep.subr.mxu0 0.0
    %512 = vmatpush2.msra.mxu0 0.0
    %513 = vmatprep.subr.mxu0 0.0
    %514 = vmatpush2.msra.mxu0 0.0
    %515 = vmatprep.subr.mxu0 0.0
    %516 = vmatpush2.msra.mxu0 0.0
    %517 = vmatprep.subr.mxu0 0.0
    %518 = vmatpush2.msra.mxu0 0.0
    %519 = vmatprep.subr.mxu0 0.0
    %520 = vmatpush2.msra.mxu0 0.0
    %521 = vmatprep.subr.mxu0 0.0
    %522 = vmatpush2.msra.mxu0 0.0
    %523 = vmatprep.subr.mxu0 0.0
    %524 = vmatpush2.msra.mxu0 0.0
    %525 = vmatprep.mubr.f32.mxu0 0.0
    %526 = vmatmul.mubr.f32.gmra.mxu0 %v459
    %v527 = vpop.f32.mrf.mxu0
    %v528 = vadd.f32 0.0, %v527
    %v529 = vpop.f32.mrf.mxu0
    %530 = vdwg.mxu0
    %v531 = vadd.f32 %v458, %v528
    %v532 = vxor.u32 %v531, 2147483648
    %v533 = vmul.f32 %v532, 1.442695
    %v534 = vpow.pop %v533
    %v535 = vadd.f32 %v534, 1.0
    %v536 = vrcp.pop %v535
    %v537 = vmul.f32 1.0, %v536
    %v538 = vtanh.pop %v531
    %v539 = vsel %vm37, %v538, %v537
    %v540 = vmul.f32 %v539, %v444
    %542 = vrot.lane.b32.xlu0 %v539, 64
    %v543 = vpop.permute.xlu0 %542
    %v545 = vmul.f32 %v539, %v543
    %547 = vrot.lane.b32.xlu0 %v545, 32
    %v548 = vpop.permute.xlu0 %547
    %v550 = vadd.f32 %v540, %v548
    %v551 = vtanh.pop %v550
    %553 = vrot.lane.b32.xlu0 %v551, 64
    %v554 = vpop.permute.xlu0 %553
    %v556 = vmul.f32 %v539, %v554
    %558 = vrot.lane.b32.xlu0 %v556, 32
    %v559 = vpop.permute.xlu0 %558
    %s561 = scalar_lea.vmem [#allocation3], 6
    %562 = vst.msk [vmem:[%s561] sm:$0x3] %vm243, %v559
    %s563 = scalar_lea.vmem [#allocation2], 8
    %v564 = vld [vmem:[%s563] sm:$0x3]
    %v565 = vsel %vm51, %v559, 0
    %567 = vmatprep.subr.mxu0 0.0
    %568 = vmatpush1.msra.mxu0 0.0
    %569 = vmatprep.subr.mxu0 0.0
    %570 = vmatpush1.msra.mxu0 0.0
    %571 = vmatprep.subr.mxu0 0.0
    %572 = vmatpush1.msra.mxu0 0.0
    %573 = vmatprep.subr.mxu0 0.0
    %574 = vmatpush1.msra.mxu0 0.0
    %575 = vmatprep.subr.mxu0 0.0
    %576 = vmatpush1.msra.mxu0 0.0
    %577 = vmatprep.subr.mxu0 0.0
    %578 = vmatpush1.msra.mxu0 0.0
    %579 = vmatprep.subr.mxu0 0.0
    %580 = vmatpush1.msra.mxu0 0.0
    %581 = vmatprep.subr.mxu0 0.0
    %582 = vmatpush1.msra.mxu0 0.0
    %583 = vmatprep.subr.mxu0 0.0
    %584 = vmatpush1.msra.mxu0 0.0
    %585 = vmatprep.subr.mxu0 0.0
    %586 = vmatpush1.msra.mxu0 0.0
    %587 = vmatprep.subr.mxu0 0.0
    %588 = vmatpush1.msra.mxu0 0.0
    %589 = vmatprep.subr.mxu0 0.0
    %590 = vmatpush1.msra.mxu0 0.0
    %591 = vmatprep.subr.mxu0 0.0
    %592 = vmatpush1.msra.mxu0 %v138
    %593 = vmatprep.subr.mxu0 0.0
    %594 = vmatpush1.msra.mxu0 %v137
    %595 = vmatprep.subr.mxu0 0.0
    %596 = vmatpush1.msra.mxu0 %v136
    %597 = vmatprep.subr.mxu0 0.0
    %598 = vmatpush1.msra.mxu0 %v135
    %599 = vmatprep.subr.mxu0 0.0
    %600 = vmatpush2.msra.mxu0 0.0
    %601 = vmatprep.subr.mxu0 0.0
    %602 = vmatpush2.msra.mxu0 0.0
    %603 = vmatprep.subr.mxu0 0.0
    %604 = vmatpush2.msra.mxu0 0.0
    %605 = vmatprep.subr.mxu0 0.0
    %606 = vmatpush2.msra.mxu0 0.0
    %607 = vmatprep.subr.mxu0 0.0
    %608 = vmatpush2.msra.mxu0 0.0
    %609 = vmatprep.subr.mxu0 0.0
    %610 = vmatpush2.msra.mxu0 0.0
    %611 = vmatprep.subr.mxu0 0.0
    %612 = vmatpush2.msra.mxu0 0.0
    %613 = vmatprep.subr.mxu0 0.0
    %614 = vmatpush2.msra.mxu0 0.0
    %615 = vmatprep.subr.mxu0 0.0
    %616 = vmatpush2.msra.mxu0 0.0
    %617 = vmatprep.subr.mxu0 0.0
    %618 = vmatpush2.msra.mxu0 0.0
    %619 = vmatprep.subr.mxu0 0.0
    %620 = vmatpush2.msra.mxu0 0.0
    %621 = vmatprep.subr.mxu0 0.0
    %622 = vmatpush2.msra.mxu0 0.0
    %623 = vmatprep.subr.mxu0 0.0
    %624 = vmatpush2.msra.mxu0 0.0
    %625 = vmatprep.subr.mxu0 0.0
    %626 = vmatpush2.msra.mxu0 0.0
    %627 = vmatprep.subr.mxu0 0.0
    %628 = vmatpush2.msra.mxu0 0.0
    %629 = vmatprep.subr.mxu0 0.0
    %630 = vmatpush2.msra.mxu0 0.0
    %631 = vmatprep.mubr.f32.mxu0 0.0
    %632 = vmatmul.mubr.f32.gmra.mxu0 %v565
    %v633 = vpop.f32.mrf.mxu0
    %v634 = vadd.f32 0.0, %v633
    %v635 = vpop.f32.mrf.mxu0
    %636 = vdwg.mxu0
    %v637 = vadd.f32 %v564, %v634
    %v638 = vxor.u32 %v637, 2147483648
    %v639 = vmul.f32 %v638, 1.442695
    %v640 = vpow.pop %v639
    %v641 = vadd.f32 %v640, 1.0
    %v642 = vrcp.pop %v641
    %v643 = vmul.f32 1.0, %v642
    %v644 = vtanh.pop %v637
    %v645 = vsel %vm37, %v644, %v643
    %v646 = vmul.f32 %v645, %v550
    %648 = vrot.lane.b32.xlu0 %v645, 64
    %v649 = vpop.permute.xlu0 %648
    %v651 = vmul.f32 %v645, %v649
    %653 = vrot.lane.b32.xlu0 %v651, 32
    %v654 = vpop.permute.xlu0 %653
    %v656 = vadd.f32 %v646, %v654
    %v657 = vtanh.pop %v656
    %659 = vrot.lane.b32.xlu0 %v657, 64
    %v660 = vpop.permute.xlu0 %659
    %v662 = vmul.f32 %v645, %v660
    %664 = vrot.lane.b32.xlu0 %v662, 32
    %v665 = vpop.permute.xlu0 %664
    %s667 = scalar_lea.vmem [#allocation3], 8
    %668 = vst.msk [vmem:[%s667] sm:$0x3] %vm243, %v665
    %s669 = scalar_lea.vmem [#allocation2], 10
    %v670 = vld [vmem:[%s669] sm:$0x3]
    %v671 = vsel %vm51, %v665, 0
    %673 = vmatprep.subr.mxu0 0.0
    %674 = vmatpush1.msra.mxu0 0.0
    %675 = vmatprep.subr.mxu0 0.0
    %676 = vmatpush1.msra.mxu0 0.0
    %677 = vmatprep.subr.mxu0 0.0
    %678 = vmatpush1.msra.mxu0 0.0
    %679 = vmatprep.subr.mxu0 0.0
    %680 = vmatpush1.msra.mxu0 0.0
    %681 = vmatprep.subr.mxu0 0.0
    %682 = vmatpush1.msra.mxu0 0.0
    %683 = vmatprep.subr.mxu0 0.0
    %684 = vmatpush1.msra.mxu0 0.0
    %685 = vmatprep.subr.mxu0 0.0
    %686 = vmatpush1.msra.mxu0 0.0
    %687 = vmatprep.subr.mxu0 0.0
    %688 = vmatpush1.msra.mxu0 0.0
    %689 = vmatprep.subr.mxu0 0.0
    %690 = vmatpush1.msra.mxu0 0.0
    %691 = vmatprep.subr.mxu0 0.0
    %692 = vmatpush1.msra.mxu0 0.0
    %693 = vmatprep.subr.mxu0 0.0
    %694 = vmatpush1.msra.mxu0 0.0
    %695 = vmatprep.subr.mxu0 0.0
    %696 = vmatpush1.msra.mxu0 0.0
    %697 = vmatprep.subr.mxu0 0.0
    %698 = vmatpush1.msra.mxu0 %v138
    %699 = vmatprep.subr.mxu0 0.0
    %700 = vmatpush1.msra.mxu0 %v137
    %701 = vmatprep.subr.mxu0 0.0
    %702 = vmatpush1.msra.mxu0 %v136
    %703 = vmatprep.subr.mxu0 0.0
    %704 = vmatpush1.msra.mxu0 %v135
    %705 = vmatprep.subr.mxu0 0.0
    %706 = vmatpush2.msra.mxu0 0.0
    %707 = vmatprep.subr.mxu0 0.0
    %708 = vmatpush2.msra.mxu0 0.0
    %709 = vmatprep.subr.mxu0 0.0
    %710 = vmatpush2.msra.mxu0 0.0
    %711 = vmatprep.subr.mxu0 0.0
    %712 = vmatpush2.msra.mxu0 0.0
    %713 = vmatprep.subr.mxu0 0.0
    %714 = vmatpush2.msra.mxu0 0.0
    %715 = vmatprep.subr.mxu0 0.0
    %716 = vmatpush2.msra.mxu0 0.0
    %717 = vmatprep.subr.mxu0 0.0
    %718 = vmatpush2.msra.mxu0 0.0
    %719 = vmatprep.subr.mxu0 0.0
    %720 = vmatpush2.msra.mxu0 0.0
    %721 = vmatprep.subr.mxu0 0.0
    %722 = vmatpush2.msra.mxu0 0.0
    %723 = vmatprep.subr.mxu0 0.0
    %724 = vmatpush2.msra.mxu0 0.0
    %725 = vmatprep.subr.mxu0 0.0
    %726 = vmatpush2.msra.mxu0 0.0
    %727 = vmatprep.subr.mxu0 0.0
    %728 = vmatpush2.msra.mxu0 0.0
    %729 = vmatprep.subr.mxu0 0.0
    %730 = vmatpush2.msra.mxu0 0.0
    %731 = vmatprep.subr.mxu0 0.0
    %732 = vmatpush2.msra.mxu0 0.0
    %733 = vmatprep.subr.mxu0 0.0
    %734 = vmatpush2.msra.mxu0 0.0
    %735 = vmatprep.subr.mxu0 0.0
    %736 = vmatpush2.msra.mxu0 0.0
    %737 = vmatprep.mubr.f32.mxu0 0.0
    %738 = vmatmul.mubr.f32.gmra.mxu0 %v671
    %v739 = vpop.f32.mrf.mxu0
    %v740 = vadd.f32 0.0, %v739
    %v741 = vpop.f32.mrf.mxu0
    %742 = vdwg.mxu0
    %v743 = vadd.f32 %v670, %v740
    %v744 = vxor.u32 %v743, 2147483648
    %v745 = vmul.f32 %v744, 1.442695
    %v746 = vpow.pop %v745
    %v747 = vadd.f32 %v746, 1.0
    %v748 = vrcp.pop %v747
    %v749 = vmul.f32 1.0, %v748
    %v750 = vtanh.pop %v743
    %v751 = vsel %vm37, %v750, %v749
    %v752 = vmul.f32 %v751, %v656
    %754 = vrot.lane.b32.xlu0 %v751, 64
    %v755 = vpop.permute.xlu0 %754
    %v757 = vmul.f32 %v751, %v755
    %759 = vrot.lane.b32.xlu0 %v757, 32
    %v760 = vpop.permute.xlu0 %759
    %v762 = vadd.f32 %v752, %v760
    %v763 = vtanh.pop %v762
    %765 = vrot.lane.b32.xlu0 %v763, 64
    %v766 = vpop.permute.xlu0 %765
    %v768 = vmul.f32 %v751, %v766
    %770 = vrot.lane.b32.xlu0 %v768, 32
    %v771 = vpop.permute.xlu0 %770
    %s773 = scalar_lea.vmem [#allocation3], 10
    %774 = vst.msk [vmem:[%s773] sm:$0x3] %vm243, %v771
    %s775 = scalar_lea.vmem [#allocation2], 12
    %v776 = vld [vmem:[%s775] sm:$0x3]
    %v777 = vsel %vm51, %v771, 0
    %779 = vmatprep.subr.mxu0 0.0
    %780 = vmatpush1.msra.mxu0 0.0
    %781 = vmatprep.subr.mxu0 0.0
    %782 = vmatpush1.msra.mxu0 0.0
    %783 = vmatprep.subr.mxu0 0.0
    %784 = vmatpush1.msra.mxu0 0.0
    %785 = vmatprep.subr.mxu0 0.0
    %786 = vmatpush1.msra.mxu0 0.0
    %787 = vmatprep.subr.mxu0 0.0
    %788 = vmatpush1.msra.mxu0 0.0
    %789 = vmatprep.subr.mxu0 0.0
    %790 = vmatpush1.msra.mxu0 0.0
    %791 = vmatprep.subr.mxu0 0.0
    %792 = vmatpush1.msra.mxu0 0.0
    %793 = vmatprep.subr.mxu0 0.0
    %794 = vmatpush1.msra.mxu0 0.0
    %795 = vmatprep.subr.mxu0 0.0
    %796 = vmatpush1.msra.mxu0 0.0
    %797 = vmatprep.subr.mxu0 0.0
    %798 = vmatpush1.msra.mxu0 0.0
    %799 = vmatprep.subr.mxu0 0.0
    %800 = vmatpush1.msra.mxu0 0.0
    %801 = vmatprep.subr.mxu0 0.0
    %802 = vmatpush1.msra.mxu0 0.0
    %803 = vmatprep.subr.mxu0 0.0
    %804 = vmatpush1.msra.mxu0 %v138
    %805 = vmatprep.subr.mxu0 0.0
    %806 = vmatpush1.msra.mxu0 %v137
    %807 = vmatprep.subr.mxu0 0.0
    %808 = vmatpush1.msra.mxu0 %v136
    %809 = vmatprep.subr.mxu0 0.0
    %810 = vmatpush1.msra.mxu0 %v135
    %811 = vmatprep.subr.mxu0 0.0
    %812 = vmatpush2.msra.mxu0 0.0
    %813 = vmatprep.subr.mxu0 0.0
    %814 = vmatpush2.msra.mxu0 0.0
    %815 = vmatprep.subr.mxu0 0.0
    %816 = vmatpush2.msra.mxu0 0.0
    %817 = vmatprep.subr.mxu0 0.0
    %818 = vmatpush2.msra.mxu0 0.0
    %819 = vmatprep.subr.mxu0 0.0
    %820 = vmatpush2.msra.mxu0 0.0
    %821 = vmatprep.subr.mxu0 0.0
    %822 = vmatpush2.msra.mxu0 0.0
    %823 = vmatprep.subr.mxu0 0.0
    %824 = vmatpush2.msra.mxu0 0.0
    %825 = vmatprep.subr.mxu0 0.0
    %826 = vmatpush2.msra.mxu0 0.0
    %827 = vmatprep.subr.mxu0 0.0
    %828 = vmatpush2.msra.mxu0 0.0
    %829 = vmatprep.subr.mxu0 0.0
    %830 = vmatpush2.msra.mxu0 0.0
    %831 = vmatprep.subr.mxu0 0.0
    %832 = vmatpush2.msra.mxu0 0.0
    %833 = vmatprep.subr.mxu0 0.0
    %834 = vmatpush2.msra.mxu0 0.0
    %835 = vmatprep.subr.mxu0 0.0
    %836 = vmatpush2.msra.mxu0 0.0
    %837 = vmatprep.subr.mxu0 0.0
    %838 = vmatpush2.msra.mxu0 0.0
    %839 = vmatprep.subr.mxu0 0.0
    %840 = vmatpush2.msra.mxu0 0.0
    %841 = vmatprep.subr.mxu0 0.0
    %842 = vmatpush2.msra.mxu0 0.0
    %843 = vmatprep.mubr.f32.mxu0 0.0
    %844 = vmatmul.mubr.f32.gmra.mxu0 %v777
    %v845 = vpop.f32.mrf.mxu0
    %v846 = vadd.f32 0.0, %v845
    %v847 = vpop.f32.mrf.mxu0
    %848 = vdwg.mxu0
    %v849 = vadd.f32 %v776, %v846
    %v850 = vxor.u32 %v849, 2147483648
    %v851 = vmul.f32 %v850, 1.442695
    %v852 = vpow.pop %v851
    %v853 = vadd.f32 %v852, 1.0
    %v854 = vrcp.pop %v853
    %v855 = vmul.f32 1.0, %v854
    %v856 = vtanh.pop %v849
    %v857 = vsel %vm37, %v856, %v855
    %v858 = vmul.f32 %v857, %v762
    %860 = vrot.lane.b32.xlu0 %v857, 64
    %v861 = vpop.permute.xlu0 %860
    %v863 = vmul.f32 %v857, %v861
    %865 = vrot.lane.b32.xlu0 %v863, 32
    %v866 = vpop.permute.xlu0 %865
    %v868 = vadd.f32 %v858, %v866
    %v869 = vtanh.pop %v868
    %871 = vrot.lane.b32.xlu0 %v869, 64
    %v872 = vpop.permute.xlu0 %871
    %v874 = vmul.f32 %v857, %v872
    %876 = vrot.lane.b32.xlu0 %v874, 32
    %v877 = vpop.permute.xlu0 %876
    %s879 = scalar_lea.vmem [#allocation3], 12
    %880 = vst.msk [vmem:[%s879] sm:$0x3] %vm243, %v877
    %s881 = scalar_lea.vmem [#allocation2], 14
    %v882 = vld [vmem:[%s881] sm:$0x3]
    %v883 = vsel %vm51, %v877, 0
    %885 = vmatprep.subr.mxu0 0.0
    %886 = vmatpush1.msra.mxu0 0.0
    %887 = vmatprep.subr.mxu0 0.0
    %888 = vmatpush1.msra.mxu0 0.0
    %889 = vmatprep.subr.mxu0 0.0
    %890 = vmatpush1.msra.mxu0 0.0
    %891 = vmatprep.subr.mxu0 0.0
    %892 = vmatpush1.msra.mxu0 0.0
    %893 = vmatprep.subr.mxu0 0.0
    %894 = vmatpush1.msra.mxu0 0.0
    %895 = vmatprep.subr.mxu0 0.0
    %896 = vmatpush1.msra.mxu0 0.0
    %897 = vmatprep.subr.mxu0 0.0
    %898 = vmatpush1.msra.mxu0 0.0
    %899 = vmatprep.subr.mxu0 0.0
    %900 = vmatpush1.msra.mxu0 0.0
    %901 = vmatprep.subr.mxu0 0.0
    %902 = vmatpush1.msra.mxu0 0.0
    %903 = vmatprep.subr.mxu0 0.0
    %904 = vmatpush1.msra.mxu0 0.0
    %905 = vmatprep.subr.mxu0 0.0
    %906 = vmatpush1.msra.mxu0 0.0
    %907 = vmatprep.subr.mxu0 0.0
    %908 = vmatpush1.msra.mxu0 0.0
    %909 = vmatprep.subr.mxu0 0.0
    %910 = vmatpush1.msra.mxu0 %v138
    %911 = vmatprep.subr.mxu0 0.0
    %912 = vmatpush1.msra.mxu0 %v137
    %913 = vmatprep.subr.mxu0 0.0
    %914 = vmatpush1.msra.mxu0 %v136
    %915 = vmatprep.subr.mxu0 0.0
    %916 = vmatpush1.msra.mxu0 %v135
    %917 = vmatprep.subr.mxu0 0.0
    %918 = vmatpush2.msra.mxu0 0.0
    %919 = vmatprep.subr.mxu0 0.0
    %920 = vmatpush2.msra.mxu0 0.0
    %921 = vmatprep.subr.mxu0 0.0
    %922 = vmatpush2.msra.mxu0 0.0
    %923 = vmatprep.subr.mxu0 0.0
    %924 = vmatpush2.msra.mxu0 0.0
    %925 = vmatprep.subr.mxu0 0.0
    %926 = vmatpush2.msra.mxu0 0.0
    %927 = vmatprep.subr.mxu0 0.0
    %928 = vmatpush2.msra.mxu0 0.0
    %929 = vmatprep.subr.mxu0 0.0
    %930 = vmatpush2.msra.mxu0 0.0
    %931 = vmatprep.subr.mxu0 0.0
    %932 = vmatpush2.msra.mxu0 0.0
    %933 = vmatprep.subr.mxu0 0.0
    %934 = vmatpush2.msra.mxu0 0.0
    %935 = vmatprep.subr.mxu0 0.0
    %936 = vmatpush2.msra.mxu0 0.0
    %937 = vmatprep.subr.mxu0 0.0
    %938 = vmatpush2.msra.mxu0 0.0
    %939 = vmatprep.subr.mxu0 0.0
    %940 = vmatpush2.msra.mxu0 0.0
    %941 = vmatprep.subr.mxu0 0.0
    %942 = vmatpush2.msra.mxu0 0.0
    %943 = vmatprep.subr.mxu0 0.0
    %944 = vmatpush2.msra.mxu0 0.0
    %945 = vmatprep.subr.mxu0 0.0
    %946 = vmatpush2.msra.mxu0 0.0
    %947 = vmatprep.subr.mxu0 0.0
    %948 = vmatpush2.msra.mxu0 0.0
    %949 = vmatprep.mubr.f32.mxu0 0.0
    %950 = vmatmul.mubr.f32.gmra.mxu0 %v883
    %v951 = vpop.f32.mrf.mxu0
    %v952 = vadd.f32 0.0, %v951
    %v953 = vpop.f32.mrf.mxu0
    %954 = vdwg.mxu0
    %v955 = vadd.f32 %v882, %v952
    %v956 = vxor.u32 %v955, 2147483648
    %v957 = vmul.f32 %v956, 1.442695
    %v958 = vpow.pop %v957
    %v959 = vadd.f32 %v958, 1.0
    %v960 = vrcp.pop %v959
    %v961 = vmul.f32 1.0, %v960
    %v962 = vtanh.pop %v955
    %v963 = vsel %vm37, %v962, %v961
    %v964 = vmul.f32 %v963, %v868
    %966 = vrot.lane.b32.xlu0 %v963, 64
    %v967 = vpop.permute.xlu0 %966
    %v969 = vmul.f32 %v963, %v967
    %971 = vrot.lane.b32.xlu0 %v969, 32
    %v972 = vpop.permute.xlu0 %971
    %v974 = vadd.f32 %v964, %v972
    %v975 = vtanh.pop %v974
    %977 = vrot.lane.b32.xlu0 %v975, 64
    %v978 = vpop.permute.xlu0 %977
    %v980 = vmul.f32 %v963, %v978
    %982 = vrot.lane.b32.xlu0 %v980, 32
    %v983 = vpop.permute.xlu0 %982
    %s985 = scalar_lea.vmem [#allocation3], 14
    %986 = vst.msk [vmem:[%s985] sm:$0x3] %vm243, %v983
    %v987 = vld [vmem:[#allocation3] sm:$0xff]
    %v988 = vld [vmem:[#allocation3 + $0x8] sm:$0xff]
    %v989 = vld [vmem:[%s4] sm:$0xff]
    %v990 = vld [vmem:[%s4 + $0x8] sm:$0xff]
    %v991 = vld [vmem:[%s4 + $0x10] sm:$0xff]
    %v992 = vld [vmem:[%s4 + $0x18] sm:$0xff]
    %v993 = vld [vmem:[%s6] sm:$0x1]
    %v995 = vlaneseq
    %v996 = vshrl.u32 %v995, 7
    %v997 = vsub.s32 0, %v996
    %v998 = vrot.slane %v993, %v997
    %v1001 = vsel %vm51, %v987, 0
    %v1004 = vsel %vm51, %v988, 0
    %1006 = vmatprep.subr.mxu0 0.0
    %1007 = vmatpush1.msra.mxu0 0.0
    %1008 = vmatprep.subr.mxu0 0.0
    %1009 = vmatpush1.msra.mxu0 0.0
    %1010 = vmatprep.subr.mxu0 0.0
    %1011 = vmatpush1.msra.mxu0 0.0
    %1012 = vmatprep.subr.mxu0 0.0
    %1013 = vmatpush1.msra.mxu0 0.0
    %1014 = vmatprep.subr.mxu0 0.0
    %1015 = vmatpush1.msra.mxu0 0.0
    %1016 = vmatprep.subr.mxu0 0.0
    %1017 = vmatpush1.msra.mxu0 0.0
    %1018 = vmatprep.subr.mxu0 0.0
    %1019 = vmatpush1.msra.mxu0 0.0
    %1020 = vmatprep.subr.mxu0 0.0
    %1021 = vmatpush1.msra.mxu0 0.0
    %1022 = vmatprep.subr.mxu0 0.0
    %1023 = vmatpush1.msra.mxu0 0.0
    %1024 = vmatprep.subr.mxu0 0.0
    %1025 = vmatpush1.msra.mxu0 0.0
    %1026 = vmatprep.subr.mxu0 0.0
    %1027 = vmatpush1.msra.mxu0 0.0
    %1028 = vmatprep.subr.mxu0 0.0
    %1029 = vmatpush1.msra.mxu0 0.0
    %1030 = vmatprep.subr.mxu0 0.0
    %1031 = vmatpush1.msra.mxu0 %v992
    %1032 = vmatprep.subr.mxu0 0.0
    %1033 = vmatpush1.msra.mxu0 %v991
    %1034 = vmatprep.subr.mxu0 0.0
    %1035 = vmatpush1.msra.mxu0 %v990
    %1036 = vmatprep.subr.mxu0 0.0
    %1037 = vmatpush1.msra.mxu0 %v989
    %1038 = vmatprep.subr.mxu0 0.0
    %1039 = vmatpush2.msra.mxu0 0.0
    %1040 = vmatprep.subr.mxu0 0.0
    %1041 = vmatpush2.msra.mxu0 0.0
    %1042 = vmatprep.subr.mxu0 0.0
    %1043 = vmatpush2.msra.mxu0 0.0
    %1044 = vmatprep.subr.mxu0 0.0
    %1045 = vmatpush2.msra.mxu0 0.0
    %1046 = vmatprep.subr.mxu0 0.0
    %1047 = vmatpush2.msra.mxu0 0.0
    %1048 = vmatprep.subr.mxu0 0.0
    %1049 = vmatpush2.msra.mxu0 0.0
    %1050 = vmatprep.subr.mxu0 0.0
    %1051 = vmatpush2.msra.mxu0 0.0
    %1052 = vmatprep.subr.mxu0 0.0
    %1053 = vmatpush2.msra.mxu0 0.0
    %1054 = vmatprep.subr.mxu0 0.0
    %1055 = vmatpush2.msra.mxu0 0.0
    %1056 = vmatprep.subr.mxu0 0.0
    %1057 = vmatpush2.msra.mxu0 0.0
    %1058 = vmatprep.subr.mxu0 0.0
    %1059 = vmatpush2.msra.mxu0 0.0
    %1060 = vmatprep.subr.mxu0 0.0
    %1061 = vmatpush2.msra.mxu0 0.0
    %1062 = vmatprep.subr.mxu0 0.0
    %1063 = vmatpush2.msra.mxu0 0.0
    %1064 = vmatprep.subr.mxu0 0.0
    %1065 = vmatpush2.msra.mxu0 0.0
    %1066 = vmatprep.subr.mxu0 0.0
    %1067 = vmatpush2.msra.mxu0 0.0
    %1068 = vmatprep.subr.mxu0 0.0
    %1069 = vmatpush2.msra.mxu0 0.0
    %1070 = vmatprep.mubr.f32.mxu0 0.0
    %1071 = vmatmul.mubr.f32.gmra.mxu0 %v1001
    %v1072 = vpop.f32.mrf.mxu0
    %v1073 = vadd.f32 %v998, %v1072
    %v1074 = vpop.f32.mrf.mxu0
    %1075 = vmatprep.mubr.f32.mxu0 0.0
    %1076 = vmatmul.mubr.f32.gmra.mxu0 %v1004
    %v1077 = vpop.f32.mrf.mxu0
    %v1078 = vadd.f32 %v998, %v1077
    %v1079 = vpop.f32.mrf.mxu0
    %1080 = vdwg.mxu0
    %1081 = vst [vmem:[#allocation2] sm:$0xff] %v1073
    %1082 = vst [vmem:[#allocation2 + $0x8] sm:$0xff] %v1078
    %v1083 = vld [vmem:[%s5] sm:$0xff]
    %v1084 = vld [vmem:[%s5 + $0x8] sm:$0xff]
    %v1085 = vld [vmem:[%s5 + $0x10] sm:$0xff]
    %v1086 = vld [vmem:[%s5 + $0x18] sm:$0xff]
    %v1087 = vld [vmem:[#allocation2] sm:$0x3]
    %1088 = vmatprep.subr.mxu0 0.0
    %1089 = vmatpush1.msra.mxu0 0.0
    %1090 = vmatprep.subr.mxu0 0.0
    %1091 = vmatpush1.msra.mxu0 0.0
    %1092 = vmatprep.subr.mxu0 0.0
    %1093 = vmatpush1.msra.mxu0 0.0
    %1094 = vmatprep.subr.mxu0 0.0
    %1095 = vmatpush1.msra.mxu0 0.0
    %1096 = vmatprep.subr.mxu0 0.0
    %1097 = vmatpush1.msra.mxu0 0.0
    %1098 = vmatprep.subr.mxu0 0.0
    %1099 = vmatpush1.msra.mxu0 0.0
    %1100 = vmatprep.subr.mxu0 0.0
    %1101 = vmatpush1.msra.mxu0 0.0
    %1102 = vmatprep.subr.mxu0 0.0
    %1103 = vmatpush1.msra.mxu0 0.0
    %1104 = vmatprep.subr.mxu0 0.0
    %1105 = vmatpush1.msra.mxu0 0.0
    %1106 = vmatprep.subr.mxu0 0.0
    %1107 = vmatpush1.msra.mxu0 0.0
    %1108 = vmatprep.subr.mxu0 0.0
    %1109 = vmatpush1.msra.mxu0 0.0
    %1110 = vmatprep.subr.mxu0 0.0
    %1111 = vmatpush1.msra.mxu0 0.0
    %1112 = vmatprep.subr.mxu0 0.0
    %1113 = vmatpush1.msra.mxu0 %v1086
    %1114 = vmatprep.subr.mxu0 0.0
    %1115 = vmatpush1.msra.mxu0 %v1085
    %1116 = vmatprep.subr.mxu0 0.0
    %1117 = vmatpush1.msra.mxu0 %v1084
    %1118 = vmatprep.subr.mxu0 0.0
    %1119 = vmatpush1.msra.mxu0 %v1083
    %1120 = vmatprep.subr.mxu0 0.0
    %1121 = vmatpush2.msra.mxu0 0.0
    %1122 = vmatprep.subr.mxu0 0.0
    %1123 = vmatpush2.msra.mxu0 0.0
    %1124 = vmatprep.subr.mxu0 0.0
    %1125 = vmatpush2.msra.mxu0 0.0
    %1126 = vmatprep.subr.mxu0 0.0
    %1127 = vmatpush2.msra.mxu0 0.0
    %1128 = vmatprep.subr.mxu0 0.0
    %1129 = vmatpush2.msra.mxu0 0.0
    %1130 = vmatprep.subr.mxu0 0.0
    %1131 = vmatpush2.msra.mxu0 0.0
    %1132 = vmatprep.subr.mxu0 0.0
    %1133 = vmatpush2.msra.mxu0 0.0
    %1134 = vmatprep.subr.mxu0 0.0
    %1135 = vmatpush2.msra.mxu0 0.0
    %1136 = vmatprep.subr.mxu0 0.0
    %1137 = vmatpush2.msra.mxu0 0.0
    %1138 = vmatprep.subr.mxu0 0.0
    %1139 = vmatpush2.msra.mxu0 0.0
    %1140 = vmatprep.subr.mxu0 0.0
    %1141 = vmatpush2.msra.mxu0 0.0
    %1142 = vmatprep.subr.mxu0 0.0
    %1143 = vmatpush2.msra.mxu0 0.0
    %1144 = vmatprep.subr.mxu0 0.0
    %1145 = vmatpush2.msra.mxu0 0.0
    %1146 = vmatprep.subr.mxu0 0.0
    %1147 = vmatpush2.msra.mxu0 0.0
    %1148 = vmatprep.subr.mxu0 0.0
    %1149 = vmatpush2.msra.mxu0 0.0
    %1150 = vmatprep.subr.mxu0 0.0
    %1151 = vmatpush2.msra.mxu0 0.0
    %1152 = vmatprep.mubr.f32.mxu0 0.0
    %1153 = vmatmul.mubr.f32.gmra.mxu0 %v141
    %v1154 = vpop.f32.mrf.mxu0
    %v1155 = vadd.f32 0.0, %v1154
    %v1156 = vpop.f32.mrf.mxu0
    %1157 = vdwg.mxu0
    %v1158 = vadd.f32 %v1087, %v1155
    %v1159 = vxor.u32 %v1158, 2147483648
    %v1160 = vmul.f32 %v1159, 1.442695
    %v1161 = vpow.pop %v1160
    %v1162 = vadd.f32 %v1161, 1.0
    %v1163 = vrcp.pop %v1162
    %v1164 = vmul.f32 1.0, %v1163
    %v1165 = vtanh.pop %v1158
    %v1166 = vsel %vm37, %v1165, %v1164
    %v1167 = vmul.f32 %v1166, 0.0
    %1169 = vrot.lane.b32.xlu0 %v1166, 64
    %v1170 = vpop.permute.xlu0 %1169
    %v1172 = vmul.f32 %v1166, %v1170
    %1174 = vrot.lane.b32.xlu0 %v1172, 32
    %v1175 = vpop.permute.xlu0 %1174
    %v1177 = vadd.f32 %v1167, %v1175
    %v1178 = vtanh.pop %v1177
    %1180 = vrot.lane.b32.xlu0 %v1178, 64
    %v1181 = vpop.permute.xlu0 %1180
    %v1183 = vmul.f32 %v1166, %v1181
    %1185 = vrot.lane.b32.xlu0 %v1183, 32
    %v1186 = vpop.permute.xlu0 %1185
    %vm1188 = vcmask 253952
    %1189 = vst.msk [vmem:[#allocation4] sm:$0x1] %vm1188, %v1186
    %vm1190 = vcmask 254977
    %1191 = vst.msk [vmem:[#allocation4 + $0x7] sm:$0x2] %vm1190, %v1186
    %v1192 = vld [vmem:[%s245] sm:$0x3]
    %v1193 = vsel %vm51, %v1186, 0
    %1195 = vmatprep.subr.mxu0 0.0
    %1196 = vmatpush1.msra.mxu0 0.0
    %1197 = vmatprep.subr.mxu0 0.0
    %1198 = vmatpush1.msra.mxu0 0.0
    %1199 = vmatprep.subr.mxu0 0.0
    %1200 = vmatpush1.msra.mxu0 0.0
    %1201 = vmatprep.subr.mxu0 0.0
    %1202 = vmatpush1.msra.mxu0 0.0
    %1203 = vmatprep.subr.mxu0 0.0
    %1204 = vmatpush1.msra.mxu0 0.0
    %1205 = vmatprep.subr.mxu0 0.0
    %1206 = vmatpush1.msra.mxu0 0.0
    %1207 = vmatprep.subr.mxu0 0.0
    %1208 = vmatpush1.msra.mxu0 0.0
    %1209 = vmatprep.subr.mxu0 0.0
    %1210 = vmatpush1.msra.mxu0 0.0
    %1211 = vmatprep.subr.mxu0 0.0
    %1212 = vmatpush1.msra.mxu0 0.0
    %1213 = vmatprep.subr.mxu0 0.0
    %1214 = vmatpush1.msra.mxu0 0.0
    %1215 = vmatprep.subr.mxu0 0.0
    %1216 = vmatpush1.msra.mxu0 0.0
    %1217 = vmatprep.subr.mxu0 0.0
    %1218 = vmatpush1.msra.mxu0 0.0
    %1219 = vmatprep.subr.mxu0 0.0
    %1220 = vmatpush1.msra.mxu0 %v1086
    %1221 = vmatprep.subr.mxu0 0.0
    %1222 = vmatpush1.msra.mxu0 %v1085
    %1223 = vmatprep.subr.mxu0 0.0
    %1224 = vmatpush1.msra.mxu0 %v1084
    %1225 = vmatprep.subr.mxu0 0.0
    %1226 = vmatpush1.msra.mxu0 %v1083
    %1227 = vmatprep.subr.mxu0 0.0
    %1228 = vmatpush2.msra.mxu0 0.0
    %1229 = vmatprep.subr.mxu0 0.0
    %1230 = vmatpush2.msra.mxu0 0.0
    %1231 = vmatprep.subr.mxu0 0.0
    %1232 = vmatpush2.msra.mxu0 0.0
    %1233 = vmatprep.subr.mxu0 0.0
    %1234 = vmatpush2.msra.mxu0 0.0
    %1235 = vmatprep.subr.mxu0 0.0
    %1236 = vmatpush2.msra.mxu0 0.0
    %1237 = vmatprep.subr.mxu0 0.0
    %1238 = vmatpush2.msra.mxu0 0.0
    %1239 = vmatprep.subr.mxu0 0.0
    %1240 = vmatpush2.msra.mxu0 0.0
    %1241 = vmatprep.subr.mxu0 0.0
    %1242 = vmatpush2.msra.mxu0 0.0
    %1243 = vmatprep.subr.mxu0 0.0
    %1244 = vmatpush2.msra.mxu0 0.0
    %1245 = vmatprep.subr.mxu0 0.0
    %1246 = vmatpush2.msra.mxu0 0.0
    %1247 = vmatprep.subr.mxu0 0.0
    %1248 = vmatpush2.msra.mxu0 0.0
    %1249 = vmatprep.subr.mxu0 0.0
    %1250 = vmatpush2.msra.mxu0 0.0
    %1251 = vmatprep.subr.mxu0 0.0
    %1252 = vmatpush2.msra.mxu0 0.0
    %1253 = vmatprep.subr.mxu0 0.0
    %1254 = vmatpush2.msra.mxu0 0.0
    %1255 = vmatprep.subr.mxu0 0.0
    %1256 = vmatpush2.msra.mxu0 0.0
    %1257 = vmatprep.subr.mxu0 0.0
    %1258 = vmatpush2.msra.mxu0 0.0
    %1259 = vmatprep.mubr.f32.mxu0 0.0
    %1260 = vmatmul.mubr.f32.gmra.mxu0 %v1193
    %v1261 = vpop.f32.mrf.mxu0
    %v1262 = vadd.f32 0.0, %v1261
    %v1263 = vpop.f32.mrf.mxu0
    %1264 = vdwg.mxu0
    %v1265 = vadd.f32 %v1192, %v1262
    %v1266 = vxor.u32 %v1265, 2147483648
    %v1267 = vmul.f32 %v1266, 1.442695
    %v1268 = vpow.pop %v1267
    %v1269 = vadd.f32 %v1268, 1.0
    %v1270 = vrcp.pop %v1269
    %v1271 = vmul.f32 1.0, %v1270
    %v1272 = vtanh.pop %v1265
    %v1273 = vsel %vm37, %v1272, %v1271
    %v1274 = vmul.f32 %v1273, %v1177
    %1276 = vrot.lane.b32.xlu0 %v1273, 64
    %v1277 = vpop.permute.xlu0 %1276
    %v1279 = vmul.f32 %v1273, %v1277
    %1281 = vrot.lane.b32.xlu0 %v1279, 32
    %v1282 = vpop.permute.xlu0 %1281
    %v1284 = vadd.f32 %v1274, %v1282
    %v1285 = vtanh.pop %v1284
    %1287 = vrot.lane.b32.xlu0 %v1285, 64
    %v1288 = vpop.permute.xlu0 %1287
    %v1290 = vmul.f32 %v1273, %v1288
    %1292 = vrot.lane.b32.xlu0 %v1290, 32
    %v1293 = vpop.permute.xlu0 %1292
    %1295 = vst.msk [vmem:[#allocation4 + $0x1] sm:$0x1] %vm1188, %v1293
    %1296 = vst.msk [vmem:[#allocation4 + $0x8] sm:$0x2] %vm1190, %v1293
    %v1297 = vld [vmem:[%s351] sm:$0x3]
    %v1298 = vsel %vm51, %v1293, 0
    %1300 = vmatprep.subr.mxu0 0.0
    %1301 = vmatpush1.msra.mxu0 0.0
    %1302 = vmatprep.subr.mxu0 0.0
    %1303 = vmatpush1.msra.mxu0 0.0
    %1304 = vmatprep.subr.mxu0 0.0
    %1305 = vmatpush1.msra.mxu0 0.0
    %1306 = vmatprep.subr.mxu0 0.0
    %1307 = vmatpush1.msra.mxu0 0.0
    %1308 = vmatprep.subr.mxu0 0.0
    %1309 = vmatpush1.msra.mxu0 0.0
    %1310 = vmatprep.subr.mxu0 0.0
    %1311 = vmatpush1.msra.mxu0 0.0
    %1312 = vmatprep.subr.mxu0 0.0
    %1313 = vmatpush1.msra.mxu0 0.0
    %1314 = vmatprep.subr.mxu0 0.0
    %1315 = vmatpush1.msra.mxu0 0.0
    %1316 = vmatprep.subr.mxu0 0.0
    %1317 = vmatpush1.msra.mxu0 0.0
    %1318 = vmatprep.subr.mxu0 0.0
    %1319 = vmatpush1.msra.mxu0 0.0
    %1320 = vmatprep.subr.mxu0 0.0
    %1321 = vmatpush1.msra.mxu0 0.0
    %1322 = vmatprep.subr.mxu0 0.0
    %1323 = vmatpush1.msra.mxu0 0.0
    %1324 = vmatprep.subr.mxu0 0.0
    %1325 = vmatpush1.msra.mxu0 %v1086
    %1326 = vmatprep.subr.mxu0 0.0
    %1327 = vmatpush1.msra.mxu0 %v1085
    %1328 = vmatprep.subr.mxu0 0.0
    %1329 = vmatpush1.msra.mxu0 %v1084
    %1330 = vmatprep.subr.mxu0 0.0
    %1331 = vmatpush1.msra.mxu0 %v1083
    %1332 = vmatprep.subr.mxu0 0.0
    %1333 = vmatpush2.msra.mxu0 0.0
    %1334 = vmatprep.subr.mxu0 0.0
    %1335 = vmatpush2.msra.mxu0 0.0
    %1336 = vmatprep.subr.mxu0 0.0
    %1337 = vmatpush2.msra.mxu0 0.0
    %1338 = vmatprep.subr.mxu0 0.0
    %1339 = vmatpush2.msra.mxu0 0.0
    %1340 = vmatprep.subr.mxu0 0.0
    %1341 = vmatpush2.msra.mxu0 0.0
    %1342 = vmatprep.subr.mxu0 0.0
    %1343 = vmatpush2.msra.mxu0 0.0
    %1344 = vmatprep.subr.mxu0 0.0
    %1345 = vmatpush2.msra.mxu0 0.0
    %1346 = vmatprep.subr.mxu0 0.0
    %1347 = vmatpush2.msra.mxu0 0.0
    %1348 = vmatprep.subr.mxu0 0.0
    %1349 = vmatpush2.msra.mxu0 0.0
    %1350 = vmatprep.subr.mxu0 0.0
    %1351 = vmatpush2.msra.mxu0 0.0
    %1352 = vmatprep.subr.mxu0 0.0
    %1353 = vmatpush2.msra.mxu0 0.0
    %1354 = vmatprep.subr.mxu0 0.0
    %1355 = vmatpush2.msra.mxu0 0.0
    %1356 = vmatprep.subr.mxu0 0.0
    %1357 = vmatpush2.msra.mxu0 0.0
    %1358 = vmatprep.subr.mxu0 0.0
    %1359 = vmatpush2.msra.mxu0 0.0
    %1360 = vmatprep.subr.mxu0 0.0
    %1361 = vmatpush2.msra.mxu0 0.0
    %1362 = vmatprep.subr.mxu0 0.0
    %1363 = vmatpush2.msra.mxu0 0.0
    %1364 = vmatprep.mubr.f32.mxu0 0.0
    %1365 = vmatmul.mubr.f32.gmra.mxu0 %v1298
    %v1366 = vpop.f32.mrf.mxu0
    %v1367 = vadd.f32 0.0, %v1366
    %v1368 = vpop.f32.mrf.mxu0
    %1369 = vdwg.mxu0
    %v1370 = vadd.f32 %v1297, %v1367
    %v1371 = vxor.u32 %v1370, 2147483648
    %v1372 = vmul.f32 %v1371, 1.442695
    %v1373 = vpow.pop %v1372
    %v1374 = vadd.f32 %v1373, 1.0
    %v1375 = vrcp.pop %v1374
    %v1376 = vmul.f32 1.0, %v1375
    %v1377 = vtanh.pop %v1370
    %v1378 = vsel %vm37, %v1377, %v1376
    %v1379 = vmul.f32 %v1378, %v1284
    %1381 = vrot.lane.b32.xlu0 %v1378, 64
    %v1382 = vpop.permute.xlu0 %1381
    %v1384 = vmul.f32 %v1378, %v1382
    %1386 = vrot.lane.b32.xlu0 %v1384, 32
    %v1387 = vpop.permute.xlu0 %1386
    %v1389 = vadd.f32 %v1379, %v1387
    %v1390 = vtanh.pop %v1389
    %1392 = vrot.lane.b32.xlu0 %v1390, 64
    %v1393 = vpop.permute.xlu0 %1392
    %v1395 = vmul.f32 %v1378, %v1393
    %1397 = vrot.lane.b32.xlu0 %v1395, 32
    %v1398 = vpop.permute.xlu0 %1397
    %1400 = vst.msk [vmem:[#allocation4 + $0x2] sm:$0x1] %vm1188, %v1398
    %1401 = vst.msk [vmem:[#allocation4 + $0x9] sm:$0x2] %vm1190, %v1398
    %v1402 = vld [vmem:[%s457] sm:$0x3]
    %v1403 = vsel %vm51, %v1398, 0
    %1405 = vmatprep.subr.mxu0 0.0
    %1406 = vmatpush1.msra.mxu0 0.0
    %1407 = vmatprep.subr.mxu0 0.0
    %1408 = vmatpush1.msra.mxu0 0.0
    %1409 = vmatprep.subr.mxu0 0.0
    %1410 = vmatpush1.msra.mxu0 0.0
    %1411 = vmatprep.subr.mxu0 0.0
    %1412 = vmatpush1.msra.mxu0 0.0
    %1413 = vmatprep.subr.mxu0 0.0
    %1414 = vmatpush1.msra.mxu0 0.0
    %1415 = vmatprep.subr.mxu0 0.0
    %1416 = vmatpush1.msra.mxu0 0.0
    %1417 = vmatprep.subr.mxu0 0.0
    %1418 = vmatpush1.msra.mxu0 0.0
    %1419 = vmatprep.subr.mxu0 0.0
    %1420 = vmatpush1.msra.mxu0 0.0
    %1421 = vmatprep.subr.mxu0 0.0
    %1422 = vmatpush1.msra.mxu0 0.0
    %1423 = vmatprep.subr.mxu0 0.0
    %1424 = vmatpush1.msra.mxu0 0.0
    %1425 = vmatprep.subr.mxu0 0.0
    %1426 = vmatpush1.msra.mxu0 0.0
    %1427 = vmatprep.subr.mxu0 0.0
    %1428 = vmatpush1.msra.mxu0 0.0
    %1429 = vmatprep.subr.mxu0 0.0
    %1430 = vmatpush1.msra.mxu0 %v1086
    %1431 = vmatprep.subr.mxu0 0.0
    %1432 = vmatpush1.msra.mxu0 %v1085
    %1433 = vmatprep.subr.mxu0 0.0
    %1434 = vmatpush1.msra.mxu0 %v1084
    %1435 = vmatprep.subr.mxu0 0.0
    %1436 = vmatpush1.msra.mxu0 %v1083
    %1437 = vmatprep.subr.mxu0 0.0
    %1438 = vmatpush2.msra.mxu0 0.0
    %1439 = vmatprep.subr.mxu0 0.0
    %1440 = vmatpush2.msra.mxu0 0.0
    %1441 = vmatprep.subr.mxu0 0.0
    %1442 = vmatpush2.msra.mxu0 0.0
    %1443 = vmatprep.subr.mxu0 0.0
    %1444 = vmatpush2.msra.mxu0 0.0
    %1445 = vmatprep.subr.mxu0 0.0
    %1446 = vmatpush2.msra.mxu0 0.0
    %1447 = vmatprep.subr.mxu0 0.0
    %1448 = vmatpush2.msra.mxu0 0.0
    %1449 = vmatprep.subr.mxu0 0.0
    %1450 = vmatpush2.msra.mxu0 0.0
    %1451 = vmatprep.subr.mxu0 0.0
    %1452 = vmatpush2.msra.mxu0 0.0
    %1453 = vmatprep.subr.mxu0 0.0
    %1454 = vmatpush2.msra.mxu0 0.0
    %1455 = vmatprep.subr.mxu0 0.0
    %1456 = vmatpush2.msra.mxu0 0.0
    %1457 = vmatprep.subr.mxu0 0.0
    %1458 = vmatpush2.msra.mxu0 0.0
    %1459 = vmatprep.subr.mxu0 0.0
    %1460 = vmatpush2.msra.mxu0 0.0
    %1461 = vmatprep.subr.mxu0 0.0
    %1462 = vmatpush2.msra.mxu0 0.0
    %1463 = vmatprep.subr.mxu0 0.0
    %1464 = vmatpush2.msra.mxu0 0.0
    %1465 = vmatprep.subr.mxu0 0.0
    %1466 = vmatpush2.msra.mxu0 0.0
    %1467 = vmatprep.subr.mxu0 0.0
    %1468 = vmatpush2.msra.mxu0 0.0
    %1469 = vmatprep.mubr.f32.mxu0 0.0
    %1470 = vmatmul.mubr.f32.gmra.mxu0 %v1403
    %v1471 = vpop.f32.mrf.mxu0
    %v1472 = vadd.f32 0.0, %v1471
    %v1473 = vpop.f32.mrf.mxu0
    %1474 = vdwg.mxu0
    %v1475 = vadd.f32 %v1402, %v1472
    %v1476 = vxor.u32 %v1475, 2147483648
    %v1477 = vmul.f32 %v1476, 1.442695
    %v1478 = vpow.pop %v1477
    %v1479 = vadd.f32 %v1478, 1.0
    %v1480 = vrcp.pop %v1479
    %v1481 = vmul.f32 1.0, %v1480
    %v1482 = vtanh.pop %v1475
    %v1483 = vsel %vm37, %v1482, %v1481
    %v1484 = vmul.f32 %v1483, %v1389
    %1486 = vrot.lane.b32.xlu0 %v1483, 64
    %v1487 = vpop.permute.xlu0 %1486
    %v1489 = vmul.f32 %v1483, %v1487
    %1491 = vrot.lane.b32.xlu0 %v1489, 32
    %v1492 = vpop.permute.xlu0 %1491
    %v1494 = vadd.f32 %v1484, %v1492
    %v1495 = vtanh.pop %v1494
    %1497 = vrot.lane.b32.xlu0 %v1495, 64
    %v1498 = vpop.permute.xlu0 %1497
    %v1500 = vmul.f32 %v1483, %v1498
    %1502 = vrot.lane.b32.xlu0 %v1500, 32
    %v1503 = vpop.permute.xlu0 %1502
    %1505 = vst.msk [vmem:[#allocation4 + $0x3] sm:$0x1] %vm1188, %v1503
    %1506 = vst.msk [vmem:[#allocation4 + $0xa] sm:$0x2] %vm1190, %v1503
    %v1507 = vld [vmem:[%s563] sm:$0x3]
    %v1508 = vsel %vm51, %v1503, 0
    %1510 = vmatprep.subr.mxu0 0.0
    %1511 = vmatpush1.msra.mxu0 0.0
    %1512 = vmatprep.subr.mxu0 0.0
    %1513 = vmatpush1.msra.mxu0 0.0
    %1514 = vmatprep.subr.mxu0 0.0
    %1515 = vmatpush1.msra.mxu0 0.0
    %1516 = vmatprep.subr.mxu0 0.0
    %1517 = vmatpush1.msra.mxu0 0.0
    %1518 = vmatprep.subr.mxu0 0.0
    %1519 = vmatpush1.msra.mxu0 0.0
    %1520 = vmatprep.subr.mxu0 0.0
    %1521 = vmatpush1.msra.mxu0 0.0
    %1522 = vmatprep.subr.mxu0 0.0
    %1523 = vmatpush1.msra.mxu0 0.0
    %1524 = vmatprep.subr.mxu0 0.0
    %1525 = vmatpush1.msra.mxu0 0.0
    %1526 = vmatprep.subr.mxu0 0.0
    %1527 = vmatpush1.msra.mxu0 0.0
    %1528 = vmatprep.subr.mxu0 0.0
    %1529 = vmatpush1.msra.mxu0 0.0
    %1530 = vmatprep.subr.mxu0 0.0
    %1531 = vmatpush1.msra.mxu0 0.0
    %1532 = vmatprep.subr.mxu0 0.0
    %1533 = vmatpush1.msra.mxu0 0.0
    %1534 = vmatprep.subr.mxu0 0.0
    %1535 = vmatpush1.msra.mxu0 %v1086
    %1536 = vmatprep.subr.mxu0 0.0
    %1537 = vmatpush1.msra.mxu0 %v1085
    %1538 = vmatprep.subr.mxu0 0.0
    %1539 = vmatpush1.msra.mxu0 %v1084
    %1540 = vmatprep.subr.mxu0 0.0
    %1541 = vmatpush1.msra.mxu0 %v1083
    %1542 = vmatprep.subr.mxu0 0.0
    %1543 = vmatpush2.msra.mxu0 0.0
    %1544 = vmatprep.subr.mxu0 0.0
    %1545 = vmatpush2.msra.mxu0 0.0
    %1546 = vmatprep.subr.mxu0 0.0
    %1547 = vmatpush2.msra.mxu0 0.0
    %1548 = vmatprep.subr.mxu0 0.0
    %1549 = vmatpush2.msra.mxu0 0.0
    %1550 = vmatprep.subr.mxu0 0.0
    %1551 = vmatpush2.msra.mxu0 0.0
    %1552 = vmatprep.subr.mxu0 0.0
    %1553 = vmatpush2.msra.mxu0 0.0
    %1554 = vmatprep.subr.mxu0 0.0
    %1555 = vmatpush2.msra.mxu0 0.0
    %1556 = vmatprep.subr.mxu0 0.0
    %1557 = vmatpush2.msra.mxu0 0.0
    %1558 = vmatprep.subr.mxu0 0.0
    %1559 = vmatpush2.msra.mxu0 0.0
    %1560 = vmatprep.subr.mxu0 0.0
    %1561 = vmatpush2.msra.mxu0 0.0
    %1562 = vmatprep.subr.mxu0 0.0
    %1563 = vmatpush2.msra.mxu0 0.0
    %1564 = vmatprep.subr.mxu0 0.0
    %1565 = vmatpush2.msra.mxu0 0.0
    %1566 = vmatprep.subr.mxu0 0.0
    %1567 = vmatpush2.msra.mxu0 0.0
    %1568 = vmatprep.subr.mxu0 0.0
    %1569 = vmatpush2.msra.mxu0 0.0
    %1570 = vmatprep.subr.mxu0 0.0
    %1571 = vmatpush2.msra.mxu0 0.0
    %1572 = vmatprep.subr.mxu0 0.0
    %1573 = vmatpush2.msra.mxu0 0.0
    %1574 = vmatprep.mubr.f32.mxu0 0.0
    %1575 = vmatmul.mubr.f32.gmra.mxu0 %v1508
    %v1576 = vpop.f32.mrf.mxu0
    %v1577 = vadd.f32 0.0, %v1576
    %v1578 = vpop.f32.mrf.mxu0
    %1579 = vdwg.mxu0
    %v1580 = vadd.f32 %v1507, %v1577
    %v1581 = vxor.u32 %v1580, 2147483648
    %v1582 = vmul.f32 %v1581, 1.442695
    %v1583 = vpow.pop %v1582
    %v1584 = vadd.f32 %v1583, 1.0
    %v1585 = vrcp.pop %v1584
    %v1586 = vmul.f32 1.0, %v1585
    %v1587 = vtanh.pop %v1580
    %v1588 = vsel %vm37, %v1587, %v1586
    %v1589 = vmul.f32 %v1588, %v1494
    %1591 = vrot.lane.b32.xlu0 %v1588, 64
    %v1592 = vpop.permute.xlu0 %1591
    %v1594 = vmul.f32 %v1588, %v1592
    %1596 = vrot.lane.b32.xlu0 %v1594, 32
    %v1597 = vpop.permute.xlu0 %1596
    %v1599 = vadd.f32 %v1589, %v1597
    %v1600 = vtanh.pop %v1599
    %1602 = vrot.lane.b32.xlu0 %v1600, 64
    %v1603 = vpop.permute.xlu0 %1602
    %v1605 = vmul.f32 %v1588, %v1603
    %1607 = vrot.lane.b32.xlu0 %v1605, 32
    %v1608 = vpop.permute.xlu0 %1607
    %1610 = vst.msk [vmem:[#allocation4 + $0x4] sm:$0x1] %vm1188, %v1608
    %1611 = vst.msk [vmem:[#allocation4 + $0xb] sm:$0x2] %vm1190, %v1608
    %v1612 = vld [vmem:[%s669] sm:$0x3]
    %v1613 = vsel %vm51, %v1608, 0
    %1615 = vmatprep.subr.mxu0 0.0
    %1616 = vmatpush1.msra.mxu0 0.0
    %1617 = vmatprep.subr.mxu0 0.0
    %1618 = vmatpush1.msra.mxu0 0.0
    %1619 = vmatprep.subr.mxu0 0.0
    %1620 = vmatpush1.msra.mxu0 0.0
    %1621 = vmatprep.subr.mxu0 0.0
    %1622 = vmatpush1.msra.mxu0 0.0
    %1623 = vmatprep.subr.mxu0 0.0
    %1624 = vmatpush1.msra.mxu0 0.0
    %1625 = vmatprep.subr.mxu0 0.0
    %1626 = vmatpush1.msra.mxu0 0.0
    %1627 = vmatprep.subr.mxu0 0.0
    %1628 = vmatpush1.msra.mxu0 0.0
    %1629 = vmatprep.subr.mxu0 0.0
    %1630 = vmatpush1.msra.mxu0 0.0
    %1631 = vmatprep.subr.mxu0 0.0
    %1632 = vmatpush1.msra.mxu0 0.0
    %1633 = vmatprep.subr.mxu0 0.0
    %1634 = vmatpush1.msra.mxu0 0.0
    %1635 = vmatprep.subr.mxu0 0.0
    %1636 = vmatpush1.msra.mxu0 0.0
    %1637 = vmatprep.subr.mxu0 0.0
    %1638 = vmatpush1.msra.mxu0 0.0
    %1639 = vmatprep.subr.mxu0 0.0
    %1640 = vmatpush1.msra.mxu0 %v1086
    %1641 = vmatprep.subr.mxu0 0.0
    %1642 = vmatpush1.msra.mxu0 %v1085
    %1643 = vmatprep.subr.mxu0 0.0
    %1644 = vmatpush1.msra.mxu0 %v1084
    %1645 = vmatprep.subr.mxu0 0.0
    %1646 = vmatpush1.msra.mxu0 %v1083
    %1647 = vmatprep.subr.mxu0 0.0
    %1648 = vmatpush2.msra.mxu0 0.0
    %1649 = vmatprep.subr.mxu0 0.0
    %1650 = vmatpush2.msra.mxu0 0.0
    %1651 = vmatprep.subr.mxu0 0.0
    %1652 = vmatpush2.msra.mxu0 0.0
    %1653 = vmatprep.subr.mxu0 0.0
    %1654 = vmatpush2.msra.mxu0 0.0
    %1655 = vmatprep.subr.mxu0 0.0
    %1656 = vmatpush2.msra.mxu0 0.0
    %1657 = vmatprep.subr.mxu0 0.0
    %1658 = vmatpush2.msra.mxu0 0.0
    %1659 = vmatprep.subr.mxu0 0.0
    %1660 = vmatpush2.msra.mxu0 0.0
    %1661 = vmatprep.subr.mxu0 0.0
    %1662 = vmatpush2.msra.mxu0 0.0
    %1663 = vmatprep.subr.mxu0 0.0
    %1664 = vmatpush2.msra.mxu0 0.0
    %1665 = vmatprep.subr.mxu0 0.0
    %1666 = vmatpush2.msra.mxu0 0.0
    %1667 = vmatprep.subr.mxu0 0.0
    %1668 = vmatpush2.msra.mxu0 0.0
    %1669 = vmatprep.subr.mxu0 0.0
    %1670 = vmatpush2.msra.mxu0 0.0
    %1671 = vmatprep.subr.mxu0 0.0
    %1672 = vmatpush2.msra.mxu0 0.0
    %1673 = vmatprep.subr.mxu0 0.0
    %1674 = vmatpush2.msra.mxu0 0.0
    %1675 = vmatprep.subr.mxu0 0.0
    %1676 = vmatpush2.msra.mxu0 0.0
    %1677 = vmatprep.subr.mxu0 0.0
    %1678 = vmatpush2.msra.mxu0 0.0
    %1679 = vmatprep.mubr.f32.mxu0 0.0
    %1680 = vmatmul.mubr.f32.gmra.mxu0 %v1613
    %v1681 = vpop.f32.mrf.mxu0
    %v1682 = vadd.f32 0.0, %v1681
    %v1683 = vpop.f32.mrf.mxu0
    %1684 = vdwg.mxu0
    %v1685 = vadd.f32 %v1612, %v1682
    %v1686 = vxor.u32 %v1685, 2147483648
    %v1687 = vmul.f32 %v1686, 1.442695
    %v1688 = vpow.pop %v1687
    %v1689 = vadd.f32 %v1688, 1.0
    %v1690 = vrcp.pop %v1689
    %v1691 = vmul.f32 1.0, %v1690
    %v1692 = vtanh.pop %v1685
    %v1693 = vsel %vm37, %v1692, %v1691
    %v1694 = vmul.f32 %v1693, %v1599
    %1696 = vrot.lane.b32.xlu0 %v1693, 64
    %v1697 = vpop.permute.xlu0 %1696
    %v1699 = vmul.f32 %v1693, %v1697
    %1701 = vrot.lane.b32.xlu0 %v1699, 32
    %v1702 = vpop.permute.xlu0 %1701
    %v1704 = vadd.f32 %v1694, %v1702
    %v1705 = vtanh.pop %v1704
    %1707 = vrot.lane.b32.xlu0 %v1705, 64
    %v1708 = vpop.permute.xlu0 %1707
    %v1710 = vmul.f32 %v1693, %v1708
    %1712 = vrot.lane.b32.xlu0 %v1710, 32
    %v1713 = vpop.permute.xlu0 %1712
    %1715 = vst.msk [vmem:[#allocation4 + $0x5] sm:$0x1] %vm1188, %v1713
    %1716 = vst.msk [vmem:[#allocation4 + $0xc] sm:$0x2] %vm1190, %v1713
    %v1717 = vld [vmem:[%s775] sm:$0x3]
    %v1718 = vsel %vm51, %v1713, 0
    %1720 = vmatprep.subr.mxu0 0.0
    %1721 = vmatpush1.msra.mxu0 0.0
    %1722 = vmatprep.subr.mxu0 0.0
    %1723 = vmatpush1.msra.mxu0 0.0
    %1724 = vmatprep.subr.mxu0 0.0
    %1725 = vmatpush1.msra.mxu0 0.0
    %1726 = vmatprep.subr.mxu0 0.0
    %1727 = vmatpush1.msra.mxu0 0.0
    %1728 = vmatprep.subr.mxu0 0.0
    %1729 = vmatpush1.msra.mxu0 0.0
    %1730 = vmatprep.subr.mxu0 0.0
    %1731 = vmatpush1.msra.mxu0 0.0
    %1732 = vmatprep.subr.mxu0 0.0
    %1733 = vmatpush1.msra.mxu0 0.0
    %1734 = vmatprep.subr.mxu0 0.0
    %1735 = vmatpush1.msra.mxu0 0.0
    %1736 = vmatprep.subr.mxu0 0.0
    %1737 = vmatpush1.msra.mxu0 0.0
    %1738 = vmatprep.subr.mxu0 0.0
    %1739 = vmatpush1.msra.mxu0 0.0
    %1740 = vmatprep.subr.mxu0 0.0
    %1741 = vmatpush1.msra.mxu0 0.0
    %1742 = vmatprep.subr.mxu0 0.0
    %1743 = vmatpush1.msra.mxu0 0.0
    %1744 = vmatprep.subr.mxu0 0.0
    %1745 = vmatpush1.msra.mxu0 %v1086
    %1746 = vmatprep.subr.mxu0 0.0
    %1747 = vmatpush1.msra.mxu0 %v1085
    %1748 = vmatprep.subr.mxu0 0.0
    %1749 = vmatpush1.msra.mxu0 %v1084
    %1750 = vmatprep.subr.mxu0 0.0
    %1751 = vmatpush1.msra.mxu0 %v1083
    %1752 = vmatprep.subr.mxu0 0.0
    %1753 = vmatpush2.msra.mxu0 0.0
    %1754 = vmatprep.subr.mxu0 0.0
    %1755 = vmatpush2.msra.mxu0 0.0
    %1756 = vmatprep.subr.mxu0 0.0
    %1757 = vmatpush2.msra.mxu0 0.0
    %1758 = vmatprep.subr.mxu0 0.0
    %1759 = vmatpush2.msra.mxu0 0.0
    %1760 = vmatprep.subr.mxu0 0.0
    %1761 = vmatpush2.msra.mxu0 0.0
    %1762 = vmatprep.subr.mxu0 0.0
    %1763 = vmatpush2.msra.mxu0 0.0
    %1764 = vmatprep.subr.mxu0 0.0
    %1765 = vmatpush2.msra.mxu0 0.0
    %1766 = vmatprep.subr.mxu0 0.0
    %1767 = vmatpush2.msra.mxu0 0.0
    %1768 = vmatprep.subr.mxu0 0.0
    %1769 = vmatpush2.msra.mxu0 0.0
    %1770 = vmatprep.subr.mxu0 0.0
    %1771 = vmatpush2.msra.mxu0 0.0
    %1772 = vmatprep.subr.mxu0 0.0
    %1773 = vmatpush2.msra.mxu0 0.0
    %1774 = vmatprep.subr.mxu0 0.0
    %1775 = vmatpush2.msra.mxu0 0.0
    %1776 = vmatprep.subr.mxu0 0.0
    %1777 = vmatpush2.msra.mxu0 0.0
    %1778 = vmatprep.subr.mxu0 0.0
    %1779 = vmatpush2.msra.mxu0 0.0
    %1780 = vmatprep.subr.mxu0 0.0
    %1781 = vmatpush2.msra.mxu0 0.0
    %1782 = vmatprep.subr.mxu0 0.0
    %1783 = vmatpush2.msra.mxu0 0.0
    %1784 = vmatprep.mubr.f32.mxu0 0.0
    %1785 = vmatmul.mubr.f32.gmra.mxu0 %v1718
    %v1786 = vpop.f32.mrf.mxu0
    %v1787 = vadd.f32 0.0, %v1786
    %v1788 = vpop.f32.mrf.mxu0
    %1789 = vdwg.mxu0
    %v1790 = vadd.f32 %v1717, %v1787
    %v1791 = vxor.u32 %v1790, 2147483648
    %v1792 = vmul.f32 %v1791, 1.442695
    %v1793 = vpow.pop %v1792
    %v1794 = vadd.f32 %v1793, 1.0
    %v1795 = vrcp.pop %v1794
    %v1796 = vmul.f32 1.0, %v1795
    %v1797 = vtanh.pop %v1790
    %v1798 = vsel %vm37, %v1797, %v1796
    %v1799 = vmul.f32 %v1798, %v1704
    %1801 = vrot.lane.b32.xlu0 %v1798, 64
    %v1802 = vpop.permute.xlu0 %1801
    %v1804 = vmul.f32 %v1798, %v1802
    %1806 = vrot.lane.b32.xlu0 %v1804, 32
    %v1807 = vpop.permute.xlu0 %1806
    %v1809 = vadd.f32 %v1799, %v1807
    %v1810 = vtanh.pop %v1809
    %1812 = vrot.lane.b32.xlu0 %v1810, 64
    %v1813 = vpop.permute.xlu0 %1812
    %v1815 = vmul.f32 %v1798, %v1813
    %1817 = vrot.lane.b32.xlu0 %v1815, 32
    %v1818 = vpop.permute.xlu0 %1817
    %1820 = vst.msk [vmem:[#allocation4 + $0x6] sm:$0x1] %vm1188, %v1818
    %1821 = vst.msk [vmem:[#allocation4 + $0xd] sm:$0x2] %vm1190, %v1818
    %v1822 = vld [vmem:[%s881] sm:$0x3]
    %v1823 = vsel %vm51, %v1818, 0
    %1825 = vmatprep.subr.mxu0 0.0
    %1826 = vmatpush1.msra.mxu0 0.0
    %1827 = vmatprep.subr.mxu0 0.0
    %1828 = vmatpush1.msra.mxu0 0.0
    %1829 = vmatprep.subr.mxu0 0.0
    %1830 = vmatpush1.msra.mxu0 0.0
    %1831 = vmatprep.subr.mxu0 0.0
    %1832 = vmatpush1.msra.mxu0 0.0
    %1833 = vmatprep.subr.mxu0 0.0
    %1834 = vmatpush1.msra.mxu0 0.0
    %1835 = vmatprep.subr.mxu0 0.0
    %1836 = vmatpush1.msra.mxu0 0.0
    %1837 = vmatprep.subr.mxu0 0.0
    %1838 = vmatpush1.msra.mxu0 0.0
    %1839 = vmatprep.subr.mxu0 0.0
    %1840 = vmatpush1.msra.mxu0 0.0
    %1841 = vmatprep.subr.mxu0 0.0
    %1842 = vmatpush1.msra.mxu0 0.0
    %1843 = vmatprep.subr.mxu0 0.0
    %1844 = vmatpush1.msra.mxu0 0.0
    %1845 = vmatprep.subr.mxu0 0.0
    %1846 = vmatpush1.msra.mxu0 0.0
    %1847 = vmatprep.subr.mxu0 0.0
    %1848 = vmatpush1.msra.mxu0 0.0
    %1849 = vmatprep.subr.mxu0 0.0
    %1850 = vmatpush1.msra.mxu0 %v1086
    %1851 = vmatprep.subr.mxu0 0.0
    %1852 = vmatpush1.msra.mxu0 %v1085
    %1853 = vmatprep.subr.mxu0 0.0
    %1854 = vmatpush1.msra.mxu0 %v1084
    %1855 = vmatprep.subr.mxu0 0.0
    %1856 = vmatpush1.msra.mxu0 %v1083
    %1857 = vmatprep.subr.mxu0 0.0
    %1858 = vmatpush2.msra.mxu0 0.0
    %1859 = vmatprep.subr.mxu0 0.0
    %1860 = vmatpush2.msra.mxu0 0.0
    %1861 = vmatprep.subr.mxu0 0.0
    %1862 = vmatpush2.msra.mxu0 0.0
    %1863 = vmatprep.subr.mxu0 0.0
    %1864 = vmatpush2.msra.mxu0 0.0
    %1865 = vmatprep.subr.mxu0 0.0
    %1866 = vmatpush2.msra.mxu0 0.0
    %1867 = vmatprep.subr.mxu0 0.0
    %1868 = vmatpush2.msra.mxu0 0.0
    %1869 = vmatprep.subr.mxu0 0.0
    %1870 = vmatpush2.msra.mxu0 0.0
    %1871 = vmatprep.subr.mxu0 0.0
    %1872 = vmatpush2.msra.mxu0 0.0
    %1873 = vmatprep.subr.mxu0 0.0
    %1874 = vmatpush2.msra.mxu0 0.0
    %1875 = vmatprep.subr.mxu0 0.0
    %1876 = vmatpush2.msra.mxu0 0.0
    %1877 = vmatprep.subr.mxu0 0.0
    %1878 = vmatpush2.msra.mxu0 0.0
    %1879 = vmatprep.subr.mxu0 0.0
    %1880 = vmatpush2.msra.mxu0 0.0
    %1881 = vmatprep.subr.mxu0 0.0
    %1882 = vmatpush2.msra.mxu0 0.0
    %1883 = vmatprep.subr.mxu0 0.0
    %1884 = vmatpush2.msra.mxu0 0.0
    %1885 = vmatprep.subr.mxu0 0.0
    %1886 = vmatpush2.msra.mxu0 0.0
    %1887 = vmatprep.subr.mxu0 0.0
    %1888 = vmatpush2.msra.mxu0 0.0
    %1889 = vmatprep.mubr.f32.mxu0 0.0
    %1890 = vmatmul.mubr.f32.gmra.mxu0 %v1823
    %v1891 = vpop.f32.mrf.mxu0
    %v1892 = vadd.f32 0.0, %v1891
    %v1893 = vpop.f32.mrf.mxu0
    %1894 = vdwg.mxu0
    %v1895 = vadd.f32 %v1822, %v1892
    %v1896 = vxor.u32 %v1895, 2147483648
    %v1897 = vmul.f32 %v1896, 1.442695
    %v1898 = vpow.pop %v1897
    %v1899 = vadd.f32 %v1898, 1.0
    %v1900 = vrcp.pop %v1899
    %v1901 = vmul.f32 1.0, %v1900
    %v1902 = vtanh.pop %v1895
    %v1903 = vsel %vm37, %v1902, %v1901
    %v1904 = vmul.f32 %v1903, %v1809
    %1906 = vrot.lane.b32.xlu0 %v1903, 64
    %v1907 = vpop.permute.xlu0 %1906
    %v1909 = vmul.f32 %v1903, %v1907
    %1911 = vrot.lane.b32.xlu0 %v1909, 32
    %v1912 = vpop.permute.xlu0 %1911
    %v1914 = vadd.f32 %v1904, %v1912
    %v1915 = vtanh.pop %v1914
    %1917 = vrot.lane.b32.xlu0 %v1915, 64
    %v1918 = vpop.permute.xlu0 %1917
    %v1920 = vmul.f32 %v1903, %v1918
    %1922 = vrot.lane.b32.xlu0 %v1920, 32
    %v1923 = vpop.permute.xlu0 %1922
    %1925 = vst.msk [vmem:[#allocation4 + $0x7] sm:$0x1] %vm1188, %v1923
    %1926 = vst.msk [vmem:[#allocation4 + $0xe] sm:$0x2] %vm1190, %v1923
    %v1927 = vld [vmem:[#allocation4] sm:$0xff]
    %v1928 = vld [vmem:[#allocation4 + $0x8] sm:$0xff]
    %v1929 = vld [vmem:[%s7] sm:$0xff]
    %v1930 = vld [vmem:[%s7 + $0x8] sm:$0xff]
    %v1931 = vld [vmem:[%s7 + $0x10] sm:$0xff]
    %v1932 = vld [vmem:[%s7 + $0x18] sm:$0xff]
    %v1933 = vld [vmem:[%s8] sm:$0x1]
    %v1935 = vlaneseq
    %v1936 = vshrl.u32 %v1935, 7
    %v1937 = vsub.s32 0, %v1936
    %v1938 = vrot.slane %v1933, %v1937
    %v1941 = vsel %vm51, %v1927, 0
    %v1944 = vsel %vm51, %v1928, 0
    %1946 = vmatprep.subr.mxu0 0.0
    %1947 = vmatpush1.msra.mxu0 0.0
    %1948 = vmatprep.subr.mxu0 0.0
    %1949 = vmatpush1.msra.mxu0 0.0
    %1950 = vmatprep.subr.mxu0 0.0
    %1951 = vmatpush1.msra.mxu0 0.0
    %1952 = vmatprep.subr.mxu0 0.0
    %1953 = vmatpush1.msra.mxu0 0.0
    %1954 = vmatprep.subr.mxu0 0.0
    %1955 = vmatpush1.msra.mxu0 0.0
    %1956 = vmatprep.subr.mxu0 0.0
    %1957 = vmatpush1.msra.mxu0 0.0
    %1958 = vmatprep.subr.mxu0 0.0
    %1959 = vmatpush1.msra.mxu0 0.0
    %1960 = vmatprep.subr.mxu0 0.0
    %1961 = vmatpush1.msra.mxu0 0.0
    %1962 = vmatprep.subr.mxu0 0.0
    %1963 = vmatpush1.msra.mxu0 0.0
    %1964 = vmatprep.subr.mxu0 0.0
    %1965 = vmatpush1.msra.mxu0 0.0
    %1966 = vmatprep.subr.mxu0 0.0
    %1967 = vmatpush1.msra.mxu0 0.0
    %1968 = vmatprep.subr.mxu0 0.0
    %1969 = vmatpush1.msra.mxu0 0.0
    %1970 = vmatprep.subr.mxu0 0.0
    %1971 = vmatpush1.msra.mxu0 %v1932
    %1972 = vmatprep.subr.mxu0 0.0
    %1973 = vmatpush1.msra.mxu0 %v1931
    %1974 = vmatprep.subr.mxu0 0.0
    %1975 = vmatpush1.msra.mxu0 %v1930
    %1976 = vmatprep.subr.mxu0 0.0
    %1977 = vmatpush1.msra.mxu0 %v1929
    %1978 = vmatprep.subr.mxu0 0.0
    %1979 = vmatpush2.msra.mxu0 0.0
    %1980 = vmatprep.subr.mxu0 0.0
    %1981 = vmatpush2.msra.mxu0 0.0
    %1982 = vmatprep.subr.mxu0 0.0
    %1983 = vmatpush2.msra.mxu0 0.0
    %1984 = vmatprep.subr.mxu0 0.0
    %1985 = vmatpush2.msra.mxu0 0.0
    %1986 = vmatprep.subr.mxu0 0.0
    %1987 = vmatpush2.msra.mxu0 0.0
    %1988 = vmatprep.subr.mxu0 0.0
    %1989 = vmatpush2.msra.mxu0 0.0
    %1990 = vmatprep.subr.mxu0 0.0
    %1991 = vmatpush2.msra.mxu0 0.0
    %1992 = vmatprep.subr.mxu0 0.0
    %1993 = vmatpush2.msra.mxu0 0.0
    %1994 = vmatprep.subr.mxu0 0.0
    %1995 = vmatpush2.msra.mxu0 0.0
    %1996 = vmatprep.subr.mxu0 0.0
    %1997 = vmatpush2.msra.mxu0 0.0
    %1998 = vmatprep.subr.mxu0 0.0
    %1999 = vmatpush2.msra.mxu0 0.0
    %2000 = vmatprep.subr.mxu0 0.0
    %2001 = vmatpush2.msra.mxu0 0.0
    %2002 = vmatprep.subr.mxu0 0.0
    %2003 = vmatpush2.msra.mxu0 0.0
    %2004 = vmatprep.subr.mxu0 0.0
    %2005 = vmatpush2.msra.mxu0 0.0
    %2006 = vmatprep.subr.mxu0 0.0
    %2007 = vmatpush2.msra.mxu0 0.0
    %2008 = vmatprep.subr.mxu0 0.0
    %2009 = vmatpush2.msra.mxu0 0.0
    %2010 = vmatprep.mubr.f32.mxu0 0.0
    %2011 = vmatmul.mubr.f32.gmra.mxu0 %v1941
    %v2012 = vpop.f32.mrf.mxu0
    %v2013 = vadd.f32 %v1938, %v2012
    %v2014 = vpop.f32.mrf.mxu0
    %2015 = vmatprep.mubr.f32.mxu0 0.0
    %2016 = vmatmul.mubr.f32.gmra.mxu0 %v1944
    %v2017 = vpop.f32.mrf.mxu0
    %v2018 = vadd.f32 %v1938, %v2017
    %v2019 = vpop.f32.mrf.mxu0
    %2020 = vdwg.mxu0
    %vm2021 = vcmask 130048
    %2022 = vst.msk [vmem:[#allocation5] sm:$0xff] %vm2021, %v2013
    %2023 = vst.msk [vmem:[#allocation5 + $0x8] sm:$0xff] %vm2021, %v2018
    // Predicated region
    $region38: #{question_generator_forward.1} parent=1 // pred_check
      _
    $region39: #{question_generator_forward.1} parent=1 // pred_check_branch
      %2025 = sbr.rel (0) target = $region41
    $region40: #{question_generator_forward.1} parent=1 // pred_region
      %s2027 = ssub.s32 256, 256
      %2028 = vsyncadd [#allocation6], %s2027
      %s2029 = sshll.u32 [#allocation5], 4
      %s2030 = int_to_ptr.vmem [resolvable:$true] %s2029
      %2035 = dma.vmem_to_hbm [thread:$0]  %s2030, 256, %s9, [#allocation6], 128, 128, 8
    $region41: #{question_generator_forward.1} parent=1 // pred_fallthru
      _
    // Predicated region
    $region42: #{question_generator_forward.1} parent=1 // pred_check
      _
    $region43: #{question_generator_forward.1} parent=1 // pred_check_branch
      %2037 = sbr.rel (0) target = $region45
    $region44: #{question_generator_forward.1} parent=1 // pred_region
      %2038 = dma.done [#allocation6], 256
    $region45: #{question_generator_forward.1} parent=1 // pred_fallthru
      _
    %2039 = vsyncpa [#allocation6], 1

</llo_original>
